<compile_context>
chip_gen: v6e
topology: v6e:2x2x1
jax: 0.10.0
libtpu: 0.0.40
codegen_flags: <defaults>
</compile_context>

<pallas_src>
import math

import numpy as np
import jax
import jax.numpy as jnp
from jax.experimental import pallas as pl
from jax.experimental.pallas import tpu as pltpu

# Fused gate ordering along the (7H) gate axis:
#   0: xi/hi   1: xf/hf   2: xo/ho   3: xz/hz
#   4: xi_hat/hi_hat      5: xf_hat/hf_hat      6: xt/ht
_GATES = 7


def _round_up(v, m):
    return ((v + m - 1) // m) * m


# ----------------------------------------------------------------------------
# Pallas kernel: one MotivateCell step on a (.., tile_cols) lane-slab of the
# batch, with the gate/hidden axis on sublanes.
# ----------------------------------------------------------------------------
def make_motivate_kernel(hidden_size):
    H = hidden_size

    def kernel(xh_ref, w_ref, st_ref, out_ref):
        # Single wide MXU matmul: (Gpad, Kpad) @ (Kpad, tile) -> (Gpad, tile), f32 acc.
        pre = jnp.dot(w_ref[...], xh_ref[...],
                      preferred_element_type=jnp.float32)

        def gate(k):                      # sublane-aligned (H, tile) slice
            return pre[k * H:(k + 1) * H, :]

        i_g = jax.nn.sigmoid(gate(0))
        f_g = jax.nn.sigmoid(gate(1))
        o_g = jax.nn.sigmoid(gate(2))
        z_g = jnp.tanh(gate(3))
        i_hat = jax.nn.sigmoid(gate(4))
        f_hat = jax.nn.sigmoid(gate(5))
        # intensity_fun(x) = 5 / (1 + exp(-x/5)) = 5 * sigmoid(x / 5)
        t_g = 5.0 * jax.nn.sigmoid(gate(6) * 0.2)

        c_t = st_ref[0:H, :]
        c_hat = st_ref[H:2 * H, :]

        c_new = f_g * c_t + i_g * z_g                       # c     (returned)
        chat_new = f_hat * c_hat + i_hat * z_g              # c_hat (returned)
        ct_new = chat_new + (c_new - chat_new) * jnp.exp(-t_g)
        h_new = o_g * jnp.tanh(ct_new)                      # h     (returned)

        # Sublane-packed [h ; c ; c_hat] -> one full-lane (3H, tile) store.
        out_ref[...] = jnp.concatenate([h_new, c_new, chat_new],
                                       axis=0).astype(out_ref.dtype)

    return kernel


# ----------------------------------------------------------------------------
# Wrapper: operand fusion + transpose, per-generation lane tiling, unpacking.
# ----------------------------------------------------------------------------
def _default_tile_cols(batch):
    """1 grid step on single-TC parts (v5e/v6e); >=2 lane tiles on v7x."""
    n128 = _round_up(max(batch, 1), 128)
    try:
        kind = jax.devices()[0].device_kind.lower()
    except Exception:  # pragma: no cover - defensive; default to 1 tile
        kind = ""
    if ("v7" in kind or "7x" in kind) and n128 >= 256:
        return max(128, _round_up(pl.cdiv(batch, 2), 128))
    return min(n128, 2048)


def motivate_cell_pallas(inputs, h, c_t, c_hat, params, *, tile_cols=None):
    """One MotivateCell step.

    inputs: (N, D); h/c_t/c_hat: (N, H).  Returns (h_new, c, c_hat_new), f32.
    """
    N, D = inputs.shape
    H = h.shape[1]
    assert c_t.shape == (N, H) and c_hat.shape == (N, H)

    wx = params["wx"]      # (D, 7H) fused x-side weights
    bx = params["bx"]      # (1, 7H) fused x-side biases (h-side Linears: no bias)
    wh = params["wh"]      # (H, 7H) fused h-side weights
    G = _GATES * H
    assert wx.shape == (D, G) and wh.shape == (H, G) and bx.shape == (1, G)

    Gpad = _round_up(G, 128)          # 224 -> 256: two clean lane-groups of gates
    K = D + H + 1                     # [x | h | ones] contraction depth (bias fold)
    Kpad = _round_up(K, 16)           # bf16 sublane packing

    if tile_cols is None:
        tile_cols = _default_tile_cols(N)
    tc = max(128, _round_up(min(tile_cols, _round_up(N, 128)), 128))
    n_pad = _round_up(N, tc)

    f32 = jnp.float32

    # Fused activation operand: [x | h | 1]^T  -> (Kpad, n_pad) bf16.
    ones = jnp.ones((N, 1), f32)
    xh = jnp.concatenate([inputs.astype(f32), h.astype(f32), ones], axis=1)   # (N, K)
    xh_t = jnp.pad(xh.T.astype(jnp.bfloat16),
                   ((0, Kpad - K), (0, n_pad - N)))                           # (Kpad, n_pad)

    # Fused weight operand (bias folded in as the last input row): (Gpad, Kpad) bf16.
    w = jnp.concatenate([wx.astype(f32), wh.astype(f32), bx.astype(f32)], axis=0)  # (K, G)
    w_t = jnp.pad(w.T, ((0, Gpad - G), (0, Kpad - K))).astype(jnp.bfloat16)        # (Gpad, Kpad)

    # Fused recurrent-state operand: [c_t ; c_hat]^T -> (2H, n_pad) f32.
    st = jnp.concatenate([c_t.astype(f32), c_hat.astype(f32)], axis=1)        # (N, 2H)
    st_t = jnp.pad(st.T, ((0, 0), (0, n_pad - N)))                            # (2H, n_pad)

    grid = (n_pad // tc,)

    out = pl.pallas_call(
        make_motivate_kernel(H),
        out_shape=jax.ShapeDtypeStruct((3 * H, n_pad), f32),
        grid=grid,
        in_specs=[
            pl.BlockSpec((Kpad, tc), lambda i: (0, i)),       # [x|h|1]^T tile
            pl.BlockSpec((Gpad, Kpad), lambda i: (0, 0)),     # weights (constant)
            pl.BlockSpec((2 * H, tc), lambda i: (0, i)),      # [c_t ; c_hat]^T tile
        ],
        out_specs=pl.BlockSpec((3 * H, tc), lambda i: (0, i)),
        compiler_params=pltpu.CompilerParams(
            dimension_semantics=("parallel",)),
    )(xh_t, w_t, st_t)

    h_new = out[0:H, :N].T
    c_new = out[H:2 * H, :N].T
    chat_new = out[2 * H:3 * H, :N].T
    return h_new, c_new, chat_new


# ----------------------------------------------------------------------------
# Pure-JAX f32 reference (matches the PyTorch MotivateCell.forward exactly).
# ----------------------------------------------------------------------------
def motivate_cell_reference(inputs, h, c_t, c_hat, params):
    H = h.shape[1]
    pre = (inputs.astype(jnp.float32) @ params["wx"]
           + h.astype(jnp.float32) @ params["wh"]
           + params["bx"])

    def gate(k):
        return pre[:, k * H:(k + 1) * H]

    i_g = jax.nn.sigmoid(gate(0))
    f_g = jax.nn.sigmoid(gate(1))
    o_g = jax.nn.sigmoid(gate(2))
    z_g = jnp.tanh(gate(3))
    i_hat = jax.nn.sigmoid(gate(4))
    f_hat = jax.nn.sigmoid(gate(5))
    t_g = 5.0 / (1.0 + jnp.exp(-gate(6) / 5.0))   # intensity_fun

    c_new = f_g * c_t + i_g * z_g
    chat_new = f_hat * c_hat + i_hat * z_g
    ct_new = chat_new + (c_new - chat_new) * jnp.exp(-t_g)
    h_new = o_g * jnp.tanh(ct_new)
    return h_new, c_new, chat_new


# ----------------------------------------------------------------------------
# Deterministic parameters (torch nn.Linear-style uniform init), pre-fused:
#   wx = concat over gates of the (D, H) x-side weights  -> (D, 7H)
#   bx = concat of the x-side biases                     -> (1, 7H)
#   wh = concat over gates of the (H, H) h-side weights  -> (H, 7H), no bias
# ----------------------------------------------------------------------------
def init_motivate_params(key, input_size, hidden_size):
    D, H = input_size, hidden_size
    k_wx, k_bx, k_wh = jax.random.split(key, 3)
    kxw = jax.random.split(k_wx, _GATES)
    kxb = jax.random.split(k_bx, _GATES)
    khw = jax.random.split(k_wh, _GATES)
    bd = 1.0 / math.sqrt(D)
    bh = 1.0 / math.sqrt(H)

    wx = jnp.concatenate(
        [jax.random.uniform(k, (D, H), minval=-bd, maxval=bd, dtype=jnp.float32)
         for k in kxw], axis=1)
    bx = jnp.concatenate(
        [jax.random.uniform(k, (1, H), minval=-bd, maxval=bd, dtype=jnp.float32)
         for k in kxb], axis=1)
    wh = jnp.concatenate(
        [jax.random.uniform(k, (H, H), minval=-bh, maxval=bh, dtype=jnp.float32)
         for k in khw], axis=1)
    return {"wx": wx, "bx": bx, "wh": wh}


if __name__ == "__main__":
    input_size = 32
    hidden_size = 32
    batch = 512   # 1 lane-tile on v5e/v6e, 2 lane-tiles (both TCs) on v7x

    key = jax.random.PRNGKey(0)
    k_x, k_h, k_c, k_ch, k_p = jax.random.split(key, 5)
    inputs = jax.random.normal(k_x, (batch, input_size), dtype=jnp.float32)
    h0 = jax.random.normal(k_h, (batch, hidden_size), dtype=jnp.float32)
    c0 = jax.random.normal(k_c, (batch, hidden_size), dtype=jnp.float32)
    chat0 = jax.random.normal(k_ch, (batch, hidden_size), dtype=jnp.float32)

    params = init_motivate_params(k_p, input_size, hidden_size)

    h1, c1, chat1 = motivate_cell_pallas(inputs, h0, c0, chat0, params)
    h1, c1, chat1 = jax.block_until_ready((h1, c1, chat1))

    hr, cr, chatr = jax.block_until_ready(
        motivate_cell_reference(inputs, h0, c0, chat0, params))

    assert h1.shape == (batch, hidden_size)
    assert c1.shape == (batch, hidden_size)
    assert chat1.shape == (batch, hidden_size)

    # Tolerance covers the bf16 cast of the MXU operands (f32 accumulation,
    # f32 elementwise tail). Single-step use; see TODO about recurrent use.
    np.testing.assert_allclose(np.asarray(h1), np.asarray(hr), rtol=3e-2, atol=3e-2)
    np.testing.assert_allclose(np.asarray(c1), np.asarray(cr), rtol=3e-2, atol=3e-2)
    np.testing.assert_allclose(np.asarray(chat1), np.asarray(chatr), rtol=3e-2, atol=3e-2)

    print("KERNEL_OK")
</pallas_src>

<mosaic_0001>
module attributes {stable_mosaic.version = 11 : i64} {
  func.func @kernel(%arg0: i32, %arg1: memref<80x512xbf16, #tpu.memory_space<vmem>>, %arg2: memref<256x80xbf16, #tpu.memory_space<vmem>>, %arg3: memref<64x512xf32, #tpu.memory_space<vmem>>, %arg4: memref<96x512xf32, #tpu.memory_space<vmem>>) attributes {dimension_semantics = [#tpu.dimension_semantics<parallel>], iteration_bounds = array<i64: 1>, scalar_prefetch = 0 : i64, scratch_operands = 0 : i64, tpu.core_type = #tpu.core_type<tc>, window_params = [{transform_indices = @transform_0, window_bounds = array<i64: 80, 512>}, {pipeline_mode = #tpu.pipeline_mode<synchronous>, transform_indices = @transform_1, window_bounds = array<i64: 256, 80>}, {transform_indices = @transform_2, window_bounds = array<i64: 64, 512>}, {transform_indices = @transform_3, window_bounds = array<i64: 96, 512>}]} {
    %c0 = arith.constant 0 : index
    %c0_0 = arith.constant 0 : index
    %0 = vector.load %arg2[%c0, %c0_0] : memref<256x80xbf16, #tpu.memory_space<vmem>>, vector<256x80xbf16>
    %c0_1 = arith.constant 0 : index
    %c0_2 = arith.constant 0 : index
    %1 = vector.load %arg1[%c0_1, %c0_2] : memref<80x512xbf16, #tpu.memory_space<vmem>>, vector<80x512xbf16>
    %cst = arith.constant dense<0.000000e+00> : vector<256x512xf32>
    %2 = tpu.matmul %0, %1, %cst {dimension_numbers = #tpu.dot_dimension_numbers<[1], [0], [0], [1], [0, 0, 1, 1], [], []>} : vector<256x80xbf16>, vector<80x512xbf16>, vector<256x512xf32> -> vector<256x512xf32>
    %3 = vector.extract_strided_slice %2 {offsets = [0, 0], sizes = [32, 512], strides = [1, 1]} : vector<256x512xf32> to vector<32x512xf32>
    %4 = arith.negf %3 : vector<32x512xf32>
    %5 = math.exp %4 : vector<32x512xf32>
    %cst_3 = arith.constant 1.000000e+00 : f32
    %6 = vector.broadcast %cst_3 : f32 to vector<32x512xf32>
    %7 = arith.addf %6, %5 : vector<32x512xf32>
    %8 = arith.divf %6, %7 : vector<32x512xf32>
    %9 = vector.extract_strided_slice %2 {offsets = [32, 0], sizes = [32, 512], strides = [1, 1]} : vector<256x512xf32> to vector<32x512xf32>
    %10 = arith.negf %9 : vector<32x512xf32>
    %11 = math.exp %10 : vector<32x512xf32>
    %cst_4 = arith.constant 1.000000e+00 : f32
    %12 = vector.broadcast %cst_4 : f32 to vector<32x512xf32>
    %13 = arith.addf %12, %11 : vector<32x512xf32>
    %14 = arith.divf %12, %13 : vector<32x512xf32>
    %15 = vector.extract_strided_slice %2 {offsets = [64, 0], sizes = [32, 512], strides = [1, 1]} : vector<256x512xf32> to vector<32x512xf32>
    %16 = arith.negf %15 : vector<32x512xf32>
    %17 = math.exp %16 : vector<32x512xf32>
    %cst_5 = arith.constant 1.000000e+00 : f32
    %18 = vector.broadcast %cst_5 : f32 to vector<32x512xf32>
    %19 = arith.addf %18, %17 : vector<32x512xf32>
    %20 = arith.divf %18, %19 : vector<32x512xf32>
    %21 = vector.extract_strided_slice %2 {offsets = [96, 0], sizes = [32, 512], strides = [1, 1]} : vector<256x512xf32> to vector<32x512xf32>
    %22 = math.tanh %21 : vector<32x512xf32>
    %23 = vector.extract_strided_slice %2 {offsets = [128, 0], sizes = [32, 512], strides = [1, 1]} : vector<256x512xf32> to vector<32x512xf32>
    %24 = arith.negf %23 : vector<32x512xf32>
    %25 = math.exp %24 : vector<32x512xf32>
    %cst_6 = arith.constant 1.000000e+00 : f32
    %26 = vector.broadcast %cst_6 : f32 to vector<32x512xf32>
    %27 = arith.addf %26, %25 : vector<32x512xf32>
    %28 = arith.divf %26, %27 : vector<32x512xf32>
    %29 = vector.extract_strided_slice %2 {offsets = [160, 0], sizes = [32, 512], strides = [1, 1]} : vector<256x512xf32> to vector<32x512xf32>
    %30 = arith.negf %29 : vector<32x512xf32>
    %31 = math.exp %30 : vector<32x512xf32>
    %cst_7 = arith.constant 1.000000e+00 : f32
    %32 = vector.broadcast %cst_7 : f32 to vector<32x512xf32>
    %33 = arith.addf %32, %31 : vector<32x512xf32>
    %34 = arith.divf %32, %33 : vector<32x512xf32>
    %35 = vector.extract_strided_slice %2 {offsets = [192, 0], sizes = [32, 512], strides = [1, 1]} : vector<256x512xf32> to vector<32x512xf32>
    %cst_8 = arith.constant 2.000000e-01 : f32
    %36 = vector.broadcast %cst_8 : f32 to vector<32x512xf32>
    %37 = arith.mulf %35, %36 : vector<32x512xf32>
    %38 = arith.negf %37 : vector<32x512xf32>
    %39 = math.exp %38 : vector<32x512xf32>
    %cst_9 = arith.constant 1.000000e+00 : f32
    %40 = vector.broadcast %cst_9 : f32 to vector<32x512xf32>
    %41 = arith.addf %40, %39 : vector<32x512xf32>
    %42 = arith.divf %40, %41 : vector<32x512xf32>
    %cst_10 = arith.constant 5.000000e+00 : f32
    %43 = vector.broadcast %cst_10 : f32 to vector<32x512xf32>
    %44 = arith.mulf %43, %42 : vector<32x512xf32>
    %c0_11 = arith.constant 0 : index
    %c0_12 = arith.constant 0 : index
    %45 = vector.load %arg3[%c0_11, %c0_12] : memref<64x512xf32, #tpu.memory_space<vmem>>, vector<32x512xf32>
    %c32 = arith.constant 32 : index
    %c0_13 = arith.constant 0 : index
    %46 = vector.load %arg3[%c32, %c0_13] : memref<64x512xf32, #tpu.memory_space<vmem>>, vector<32x512xf32>
    %47 = arith.mulf %14, %45 : vector<32x512xf32>
    %48 = arith.mulf %8, %22 : vector<32x512xf32>
    %49 = arith.addf %47, %48 : vector<32x512xf32>
    %50 = arith.mulf %34, %46 : vector<32x512xf32>
    %51 = arith.mulf %28, %22 : vector<32x512xf32>
    %52 = arith.addf %50, %51 : vector<32x512xf32>
    %53 = arith.subf %49, %52 : vector<32x512xf32>
    %cst_14 = arith.constant 0.000000e+00 : f32
    %54 = vector.broadcast %cst_14 : f32 to vector<32x512xf32>
    %55 = arith.subf %54, %44 : vector<32x512xf32>
    %56 = math.exp %55 : vector<32x512xf32>
    %57 = arith.mulf %53, %56 : vector<32x512xf32>
    %58 = arith.addf %52, %57 : vector<32x512xf32>
    %59 = math.tanh %58 : vector<32x512xf32>
    %60 = arith.mulf %20, %59 : vector<32x512xf32>
    %61 = tpu.concatenate %60, %49, %52 in 0 : vector<32x512xf32>, vector<32x512xf32>, vector<32x512xf32> -> vector<96x512xf32>
    %c0_15 = arith.constant 0 : index
    %c0_16 = arith.constant 0 : index
    %62 = vector.load %arg4[%c0_15, %c0_16] : memref<96x512xf32, #tpu.memory_space<vmem>>, vector<96x512xf32>
    tpu.vector_store %arg4[%c0_15, %c0_16], %61 {strides = array<i32>} : memref<96x512xf32, #tpu.memory_space<vmem>>, vector<96x512xf32>,
    return
  }
  func.func @transform_0(%arg0: i32) -> (i32, i32) {
    %c0_i32 = arith.constant 0 : i32
    %c0_i32_0 = arith.constant 0 : i32
    return %c0_i32, %arg0 : i32, i32
  }
  func.func @transform_1(%arg0: i32) -> (i32, i32) {
    %c0_i32 = arith.constant 0 : i32
    %c0_i32_0 = arith.constant 0 : i32
    %c0_i32_1 = arith.constant 0 : i32
    return %c0_i32, %c0_i32_0 : i32, i32
  }
  func.func @transform_2(%arg0: i32) -> (i32, i32) {
    %c0_i32 = arith.constant 0 : i32
    %c0_i32_0 = arith.constant 0 : i32
    return %c0_i32, %arg0 : i32, i32
  }
  func.func @transform_3(%arg0: i32) -> (i32, i32) {
    %c0_i32 = arith.constant 0 : i32
    %c0_i32_0 = arith.constant 0 : i32
    return %c0_i32, %arg0 : i32, i32
  }
}

</mosaic_0001>

<llo_original>
// kernel: tpu_custom_call.1
$region0: #{tpu_custom_call.1}
  #allocation0 [shape = 'u32[]', space=smem, size = 0x4, offset = 0x4, fixed_abs, tag = 'smem constant byte address 0x4 - core index']
  #allocation1 [shape = 'u32[144,128]{1,0:T(1,128)}', space=vmem, size = 0x12000, scoped, tag = 'internal scratch']
  %s0 = inlined_call_operand.vmem [shape: bf16[80,512], index: 0, kind: input, shape index: {}]
  %s1 = inlined_call_operand.vmem [shape: bf16[256,80], index: 1, kind: input, shape index: {}]
  %s2 = inlined_call_operand.hbm [shape: f32[64,512], index: 2, kind: input, shape index: {}]
  %s3 = inlined_call_operand.hbm [shape: f32[96,512], index: 3, kind: output, shape index: {}]
  %s4 = sld [smem:[#allocation0]]
  $region26: #{tpu_custom_call.1} parent=0
    _
  %s6 = ssub.s32 1, %s4
  %s7 = scalar_select 0, %s6, %s4
  $region1: #{tpu_custom_call.1} parent=0
    #allocation2 [shape = 'u8[131072]{0}', space=vmem, size = 0x20000, scoped, tag = 'input window, operand 2, single buffered']
    #allocation3 [shape = 's32[1]{0}', space=sflag, size = 0x4, scoped, tag = 'scoped memory for tpu_custom_call.1']
    #allocation4 [shape = 's32[1]{0}', space=sflag, size = 0x4, scoped, tag = 'scoped memory for tpu_custom_call.1']
    #allocation5 [shape = 'u8[196608]{0}', space=vmem, size = 0x30000, scoped, tag = 'output window, operand 0, single buffered']
    %8 = vsyncpa [#allocation3], 0
    %9 = vsyncpa [#allocation4], 0
    // Predicated region
    $region2: #{tpu_custom_call.1} parent=1 // pred_check
      _
    $region3: #{tpu_custom_call.1} parent=1 // pred_check_branch
      %11 = sbr.rel (0) target = $region5
    $region4: #{tpu_custom_call.1} parent=1 // pred_region
      _
    $region5: #{tpu_custom_call.1} parent=1 // pred_fallthru
      _
    // Predicated region
    $region6: #{tpu_custom_call.1} parent=1 // pred_check
      _
    $region7: #{tpu_custom_call.1} parent=1 // pred_check_branch
      %13 = sbr.rel (0) target = $region9
    $region8: #{tpu_custom_call.1} parent=1 // pred_region
      _
    $region9: #{tpu_custom_call.1} parent=1 // pred_fallthru
      _
    // Predicated region
    $region10: #{tpu_custom_call.1} parent=1 // pred_check
      _
    $region11: #{tpu_custom_call.1} parent=1 // pred_check_branch
      %15 = sbr.rel (0) target = $region13
    $region12: #{tpu_custom_call.1} parent=1 // pred_region
      %s17 = ssub.s32 4096, 4096
      %18 = vsyncadd [#allocation3], %s17
      %s19 = sshll.u32 [#allocation2], 4
      %s20 = int_to_ptr.vmem [resolvable:$true] %s19
      %25 = dma.hbm_to_vmem [thread:$0]  %s2, 4096, %s20, [#allocation3], 512, 512, 32
    $region13: #{tpu_custom_call.1} parent=1 // pred_fallthru
      _
    // Predicated region
    $region14: #{tpu_custom_call.1} parent=1 // pred_check
      _
    $region15: #{tpu_custom_call.1} parent=1 // pred_check_branch
      %27 = sbr.rel (0) target = $region17
    $region16: #{tpu_custom_call.1} parent=1 // pred_region
      %28 = dma.done [#allocation3], 4096
    $region17: #{tpu_custom_call.1} parent=1 // pred_fallthru
      _
    %v30 = vld [vmem:[%s1] sm:$0xf]
    %v31 = vld [vmem:[%s1 + $0x4] sm:$0xf]
    %v32 = vld [vmem:[%s1 + $0x8] sm:$0xf]
    %v33 = vld [vmem:[%s1 + $0xc] sm:$0xf]
    %v34 = vld [vmem:[%s1 + $0x10] sm:$0xf]
    %v35 = vld [vmem:[%s1 + $0x14] sm:$0xf]
    %v36 = vld [vmem:[%s1 + $0x18] sm:$0xf]
    %v37 = vld [vmem:[%s1 + $0x1c] sm:$0xf]
    %v38 = vld [vmem:[%s1 + $0x20] sm:$0xf]
    %v39 = vld [vmem:[%s1 + $0x24] sm:$0xf]
    %v40 = vld [vmem:[%s1 + $0x28] sm:$0xf]
    %v41 = vld [vmem:[%s1 + $0x2c] sm:$0xf]
    %v42 = vld [vmem:[%s1 + $0x30] sm:$0xf]
    %v43 = vld [vmem:[%s1 + $0x34] sm:$0xf]
    %v44 = vld [vmem:[%s1 + $0x38] sm:$0xf]
    %v45 = vld [vmem:[%s1 + $0x3c] sm:$0xf]
    %v46 = vld [vmem:[%s1 + $0x40] sm:$0xf]
    %v47 = vld [vmem:[%s1 + $0x44] sm:$0xf]
    %v48 = vld [vmem:[%s1 + $0x48] sm:$0xf]
    %v49 = vld [vmem:[%s1 + $0x4c] sm:$0xf]
    %v50 = vld [vmem:[%s1 + $0x50] sm:$0xf]
    %v51 = vld [vmem:[%s1 + $0x54] sm:$0xf]
    %v52 = vld [vmem:[%s1 + $0x58] sm:$0xf]
    %v53 = vld [vmem:[%s1 + $0x5c] sm:$0xf]
    %v54 = vld [vmem:[%s1 + $0x60] sm:$0xf]
    %v55 = vld [vmem:[%s1 + $0x64] sm:$0xf]
    %v56 = vld [vmem:[%s1 + $0x68] sm:$0xf]
    %v57 = vld [vmem:[%s1 + $0x6c] sm:$0xf]
    %v58 = vld [vmem:[%s1 + $0x70] sm:$0xf]
    %v59 = vld [vmem:[%s1 + $0x74] sm:$0xf]
    %v60 = vld [vmem:[%s1 + $0x78] sm:$0xf]
    %v61 = vld [vmem:[%s1 + $0x7c] sm:$0xf]
    %v62 = vld [vmem:[%s0] sm:$0xff]
    %v63 = vld [vmem:[%s0 + $0x8] sm:$0xff]
    %v64 = vld [vmem:[%s0 + $0x10] sm:$0xff]
    %v65 = vld [vmem:[%s0 + $0x18] sm:$0xff]
    %v66 = vld [vmem:[%s0 + $0x20] sm:$0xff]
    %v67 = vld [vmem:[%s0 + $0x28] sm:$0xff]
    %v68 = vld [vmem:[%s0 + $0x30] sm:$0xff]
    %v69 = vld [vmem:[%s0 + $0x38] sm:$0xff]
    %v70 = vld [vmem:[%s0 + $0x40] sm:$0xff]
    %v71 = vld [vmem:[%s0 + $0x48] sm:$0xff]
    %v72 = vld [vmem:[%s0 + $0x50] sm:$0xff]
    %v73 = vld [vmem:[%s0 + $0x58] sm:$0xff]
    %v74 = vld [vmem:[%s0 + $0x60] sm:$0xff]
    %v75 = vld [vmem:[%s0 + $0x68] sm:$0xff]
    %v76 = vld [vmem:[%s0 + $0x70] sm:$0xff]
    %v77 = vld [vmem:[%s0 + $0x78] sm:$0xff]
    %v78 = vld [vmem:[%s0 + $0x80] sm:$0xff]
    %v79 = vld [vmem:[%s0 + $0x88] sm:$0xff]
    %v80 = vld [vmem:[%s0 + $0x90] sm:$0xff]
    %v81 = vld [vmem:[%s0 + $0x98] sm:$0xff]
    %v114 = vunpack.c.l.b16 %v30
    %v115 = vunpack.c.l.b16 %v31
    %v116 = vunpack.c.l.b16 %v32
    %v117 = vunpack.c.l.b16 %v33
    %v118 = vunpack.c.l.b16 %v34
    %v119 = vunpack.c.l.b16 %v35
    %v120 = vunpack.c.l.b16 %v36
    %v121 = vunpack.c.l.b16 %v37
    %v122 = vunpack.c.l.b16 %v38
    %v123 = vunpack.c.l.b16 %v39
    %v124 = vunpack.c.l.b16 %v40
    %v125 = vunpack.c.l.b16 %v41
    %v126 = vunpack.c.l.b16 %v42
    %v127 = vunpack.c.l.b16 %v43
    %v128 = vunpack.c.l.b16 %v44
    %v129 = vunpack.c.l.b16 %v45
    %v130 = vunpack.c.l.b16 %v46
    %v131 = vunpack.c.l.b16 %v47
    %v132 = vunpack.c.l.b16 %v48
    %v133 = vunpack.c.l.b16 %v49
    %v134 = vunpack.c.l.b16 %v50
    %v135 = vunpack.c.l.b16 %v51
    %v136 = vunpack.c.l.b16 %v52
    %v137 = vunpack.c.l.b16 %v53
    %v138 = vunpack.c.l.b16 %v54
    %v139 = vunpack.c.l.b16 %v55
    %v140 = vunpack.c.l.b16 %v56
    %v141 = vunpack.c.l.b16 %v57
    %v142 = vunpack.c.l.b16 %v58
    %v143 = vunpack.c.l.b16 %v59
    %v144 = vunpack.c.l.b16 %v60
    %v145 = vunpack.c.l.b16 %v61
    %v146 = vpack.c.b16 %v115, %v114
    %v147 = vpack.c.b16 %v117, %v116
    %v148 = vpack.c.b16 %v119, %v118
    %v149 = vpack.c.b16 %v121, %v120
    %v150 = vpack.c.b16 %v123, %v122
    %v151 = vpack.c.b16 %v125, %v124
    %v152 = vpack.c.b16 %v127, %v126
    %v153 = vpack.c.b16 %v129, %v128
    %v154 = vpack.c.b16 %v131, %v130
    %v155 = vpack.c.b16 %v133, %v132
    %v156 = vpack.c.b16 %v135, %v134
    %v157 = vpack.c.b16 %v137, %v136
    %v158 = vpack.c.b16 %v139, %v138
    %v159 = vpack.c.b16 %v141, %v140
    %v160 = vpack.c.b16 %v143, %v142
    %v161 = vpack.c.b16 %v145, %v144
    %v182 = vunpack.c.l.b16 %v62
    %v183 = vunpack.c.h.b16 %v62
    %v184 = vunpack.c.l.b16 %v63
    %v185 = vunpack.c.h.b16 %v63
    %v186 = vunpack.c.l.b16 %v64
    %v187 = vunpack.c.h.b16 %v64
    %v188 = vunpack.c.l.b16 %v65
    %v189 = vunpack.c.h.b16 %v65
    %v190 = vunpack.c.l.b16 %v66
    %v191 = vunpack.c.h.b16 %v66
    %v192 = vunpack.c.l.b16 %v67
    %v193 = vunpack.c.h.b16 %v67
    %v194 = vunpack.c.l.b16 %v68
    %v195 = vunpack.c.h.b16 %v68
    %v196 = vunpack.c.l.b16 %v69
    %v197 = vunpack.c.h.b16 %v69
    %v198 = vunpack.c.l.b16 %v70
    %v199 = vunpack.c.h.b16 %v70
    %v200 = vunpack.c.l.b16 %v71
    %v201 = vunpack.c.h.b16 %v71
    %v202 = vunpack.c.l.b16 %v72
    %v203 = vunpack.c.h.b16 %v72
    %v204 = vunpack.c.l.b16 %v73
    %v205 = vunpack.c.h.b16 %v73
    %v206 = vunpack.c.l.b16 %v74
    %v207 = vunpack.c.h.b16 %v74
    %v208 = vunpack.c.l.b16 %v75
    %v209 = vunpack.c.h.b16 %v75
    %v210 = vunpack.c.l.b16 %v76
    %v211 = vunpack.c.h.b16 %v76
    %v212 = vunpack.c.l.b16 %v77
    %v213 = vunpack.c.h.b16 %v77
    %v214 = vunpack.c.l.b16 %v78
    %v215 = vunpack.c.h.b16 %v78
    %v216 = vunpack.c.l.b16 %v79
    %v217 = vunpack.c.h.b16 %v79
    %v218 = vunpack.c.l.b16 %v80
    %v219 = vunpack.c.h.b16 %v80
    %v220 = vunpack.c.l.b16 %v81
    %v221 = vunpack.c.h.b16 %v81
    %v222 = vpack.c.b16 %v186, %v182
    %v223 = vpack.c.b16 %v187, %v183
    %v224 = vpack.c.b16 %v188, %v184
    %v225 = vpack.c.b16 %v189, %v185
    %v226 = vpack.c.b16 %v194, %v190
    %v227 = vpack.c.b16 %v195, %v191
    %v228 = vpack.c.b16 %v196, %v192
    %v229 = vpack.c.b16 %v197, %v193
    %v230 = vpack.c.b16 %v202, %v198
    %v231 = vpack.c.b16 %v203, %v199
    %v232 = vpack.c.b16 %v204, %v200
    %v233 = vpack.c.b16 %v205, %v201
    %v234 = vpack.c.b16 %v210, %v206
    %v235 = vpack.c.b16 %v211, %v207
    %v236 = vpack.c.b16 %v212, %v208
    %v237 = vpack.c.b16 %v213, %v209
    %v238 = vpack.c.b16 %v218, %v214
    %v239 = vpack.c.b16 %v219, %v215
    %v240 = vpack.c.b16 %v220, %v216
    %v241 = vpack.c.b16 %v221, %v217
    %vm262 = vcmask 654336
    %v264 = vsel %vm262, %v146, 0
    %v267 = vsel %vm262, %v147, 0
    %v270 = vsel %vm262, %v148, 0
    %v273 = vsel %vm262, %v149, 0
    %v276 = vsel %vm262, %v150, 0
    %v279 = vsel %vm262, %v151, 0
    %v282 = vsel %vm262, %v152, 0
    %v285 = vsel %vm262, %v153, 0
    %v288 = vsel %vm262, %v154, 0
    %v291 = vsel %vm262, %v155, 0
    %v294 = vsel %vm262, %v156, 0
    %v297 = vsel %vm262, %v157, 0
    %v300 = vsel %vm262, %v158, 0
    %v303 = vsel %vm262, %v159, 0
    %v306 = vsel %vm262, %v160, 0
    %v309 = vsel %vm262, %v161, 0
    %311 = vmatprep.subr.bf16.mxu0 0
    %312 = vmatpush1.bf16.msra.mxu0 0
    %313 = vmatprep.subr.bf16.mxu0 0
    %314 = vmatpush1.bf16.msra.mxu0 0
    %315 = vmatprep.subr.bf16.mxu0 0
    %316 = vmatpush1.bf16.msra.mxu0 0
    %317 = vmatprep.subr.bf16.mxu0 %v239
    %318 = vmatpush1.bf16.msra.mxu0 %v238
    %319 = vmatprep.subr.bf16.mxu0 %v235
    %320 = vmatpush1.bf16.msra.mxu0 %v234
    %321 = vmatprep.subr.bf16.mxu0 %v231
    %322 = vmatpush1.bf16.msra.mxu0 %v230
    %323 = vmatprep.subr.bf16.mxu0 %v227
    %324 = vmatpush1.bf16.msra.mxu0 %v226
    %325 = vmatprep.subr.bf16.mxu0 %v223
    %326 = vmatpush1.bf16.msra.mxu0 %v222
    %327 = vmatprep.subr.bf16.mxu0 0
    %328 = vmatpush2.bf16.msra.mxu0 0
    %329 = vmatprep.subr.bf16.mxu0 0
    %330 = vmatpush2.bf16.msra.mxu0 0
    %331 = vmatprep.subr.bf16.mxu0 0
    %332 = vmatpush2.bf16.msra.mxu0 0
    %333 = vmatprep.subr.bf16.mxu0 0
    %334 = vmatpush2.bf16.msra.mxu0 0
    %335 = vmatprep.subr.bf16.mxu0 0
    %336 = vmatpush2.bf16.msra.mxu0 0
    %337 = vmatprep.subr.bf16.mxu0 0
    %338 = vmatpush2.bf16.msra.mxu0 0
    %339 = vmatprep.subr.bf16.mxu0 0
    %340 = vmatpush2.bf16.msra.mxu0 0
    %341 = vmatprep.subr.bf16.mxu0 0
    %342 = vmatpush2.bf16.msra.mxu0 0
    %343 = vmatprep.mubr.bf16.mxu0 0
    %344 = vmatmul.mubr.bf16.gmra.mxu0 %v264
    %v345 = vpop.f32.mrf.mxu0
    %v346 = vadd.f32 0.0, %v345
    %v347 = vpop.f32.mrf.mxu0
    %v348 = vadd.f32 0.0, %v347
    %v349 = vpop.f32.mrf.mxu0
    %v350 = vadd.f32 0.0, %v349
    %v351 = vpop.f32.mrf.mxu0
    %v352 = vadd.f32 0.0, %v351
    %353 = vmatprep.mubr.bf16.mxu0 0
    %354 = vmatmul.mubr.bf16.gmra.mxu0 %v267
    %v355 = vpop.f32.mrf.mxu0
    %v356 = vadd.f32 0.0, %v355
    %v357 = vpop.f32.mrf.mxu0
    %v358 = vadd.f32 0.0, %v357
    %v359 = vpop.f32.mrf.mxu0
    %v360 = vadd.f32 0.0, %v359
    %v361 = vpop.f32.mrf.mxu0
    %v362 = vadd.f32 0.0, %v361
    %363 = vmatprep.mubr.bf16.mxu0 0
    %364 = vmatmul.mubr.bf16.gmra.mxu0 %v270
    %v365 = vpop.f32.mrf.mxu0
    %v366 = vadd.f32 0.0, %v365
    %v367 = vpop.f32.mrf.mxu0
    %v368 = vadd.f32 0.0, %v367
    %v369 = vpop.f32.mrf.mxu0
    %v370 = vadd.f32 0.0, %v369
    %v371 = vpop.f32.mrf.mxu0
    %v372 = vadd.f32 0.0, %v371
    %373 = vmatprep.mubr.bf16.mxu0 0
    %374 = vmatmul.mubr.bf16.gmra.mxu0 %v273
    %v375 = vpop.f32.mrf.mxu0
    %v376 = vadd.f32 0.0, %v375
    %v377 = vpop.f32.mrf.mxu0
    %v378 = vadd.f32 0.0, %v377
    %v379 = vpop.f32.mrf.mxu0
    %v380 = vadd.f32 0.0, %v379
    %v381 = vpop.f32.mrf.mxu0
    %v382 = vadd.f32 0.0, %v381
    %383 = vmatprep.mubr.bf16.mxu0 0
    %384 = vmatmul.mubr.bf16.gmra.mxu0 %v276
    %v385 = vpop.f32.mrf.mxu0
    %v386 = vadd.f32 0.0, %v385
    %v387 = vpop.f32.mrf.mxu0
    %v388 = vadd.f32 0.0, %v387
    %v389 = vpop.f32.mrf.mxu0
    %v390 = vadd.f32 0.0, %v389
    %v391 = vpop.f32.mrf.mxu0
    %v392 = vadd.f32 0.0, %v391
    %393 = vmatprep.mubr.bf16.mxu0 0
    %394 = vmatmul.mubr.bf16.gmra.mxu0 %v279
    %v395 = vpop.f32.mrf.mxu0
    %v396 = vadd.f32 0.0, %v395
    %v397 = vpop.f32.mrf.mxu0
    %v398 = vadd.f32 0.0, %v397
    %v399 = vpop.f32.mrf.mxu0
    %v400 = vadd.f32 0.0, %v399
    %v401 = vpop.f32.mrf.mxu0
    %v402 = vadd.f32 0.0, %v401
    %403 = vmatprep.mubr.bf16.mxu0 0
    %404 = vmatmul.mubr.bf16.gmra.mxu0 %v282
    %v405 = vpop.f32.mrf.mxu0
    %v406 = vadd.f32 0.0, %v405
    %v407 = vpop.f32.mrf.mxu0
    %v408 = vadd.f32 0.0, %v407
    %v409 = vpop.f32.mrf.mxu0
    %v410 = vadd.f32 0.0, %v409
    %v411 = vpop.f32.mrf.mxu0
    %v412 = vadd.f32 0.0, %v411
    %413 = vmatprep.mubr.bf16.mxu0 0
    %414 = vmatmul.mubr.bf16.gmra.mxu0 %v285
    %v415 = vpop.f32.mrf.mxu0
    %v416 = vadd.f32 0.0, %v415
    %v417 = vpop.f32.mrf.mxu0
    %v418 = vadd.f32 0.0, %v417
    %v419 = vpop.f32.mrf.mxu0
    %v420 = vadd.f32 0.0, %v419
    %v421 = vpop.f32.mrf.mxu0
    %v422 = vadd.f32 0.0, %v421
    %423 = vmatprep.mubr.bf16.mxu0 0
    %424 = vmatmul.mubr.bf16.gmra.mxu0 %v288
    %v425 = vpop.f32.mrf.mxu0
    %v426 = vadd.f32 0.0, %v425
    %v427 = vpop.f32.mrf.mxu0
    %v428 = vadd.f32 0.0, %v427
    %v429 = vpop.f32.mrf.mxu0
    %v430 = vadd.f32 0.0, %v429
    %v431 = vpop.f32.mrf.mxu0
    %v432 = vadd.f32 0.0, %v431
    %433 = vmatprep.mubr.bf16.mxu0 0
    %434 = vmatmul.mubr.bf16.gmra.mxu0 %v291
    %v435 = vpop.f32.mrf.mxu0
    %v436 = vadd.f32 0.0, %v435
    %v437 = vpop.f32.mrf.mxu0
    %v438 = vadd.f32 0.0, %v437
    %v439 = vpop.f32.mrf.mxu0
    %v440 = vadd.f32 0.0, %v439
    %v441 = vpop.f32.mrf.mxu0
    %v442 = vadd.f32 0.0, %v441
    %443 = vmatprep.mubr.bf16.mxu0 0
    %444 = vmatmul.mubr.bf16.gmra.mxu0 %v294
    %v445 = vpop.f32.mrf.mxu0
    %v446 = vadd.f32 0.0, %v445
    %v447 = vpop.f32.mrf.mxu0
    %v448 = vadd.f32 0.0, %v447
    %v449 = vpop.f32.mrf.mxu0
    %v450 = vadd.f32 0.0, %v449
    %v451 = vpop.f32.mrf.mxu0
    %v452 = vadd.f32 0.0, %v451
    %453 = vmatprep.mubr.bf16.mxu0 0
    %454 = vmatmul.mubr.bf16.gmra.mxu0 %v297
    %v455 = vpop.f32.mrf.mxu0
    %v456 = vadd.f32 0.0, %v455
    %v457 = vpop.f32.mrf.mxu0
    %v458 = vadd.f32 0.0, %v457
    %v459 = vpop.f32.mrf.mxu0
    %v460 = vadd.f32 0.0, %v459
    %v461 = vpop.f32.mrf.mxu0
    %v462 = vadd.f32 0.0, %v461
    %463 = vmatprep.mubr.bf16.mxu0 0
    %464 = vmatmul.mubr.bf16.gmra.mxu0 %v300
    %v465 = vpop.f32.mrf.mxu0
    %v466 = vadd.f32 0.0, %v465
    %v467 = vpop.f32.mrf.mxu0
    %v468 = vadd.f32 0.0, %v467
    %v469 = vpop.f32.mrf.mxu0
    %v470 = vadd.f32 0.0, %v469
    %v471 = vpop.f32.mrf.mxu0
    %v472 = vadd.f32 0.0, %v471
    %473 = vmatprep.mubr.bf16.mxu0 0
    %474 = vmatmul.mubr.bf16.gmra.mxu0 %v303
    %v475 = vpop.f32.mrf.mxu0
    %v476 = vadd.f32 0.0, %v475
    %v477 = vpop.f32.mrf.mxu0
    %v478 = vadd.f32 0.0, %v477
    %v479 = vpop.f32.mrf.mxu0
    %v480 = vadd.f32 0.0, %v479
    %v481 = vpop.f32.mrf.mxu0
    %v482 = vadd.f32 0.0, %v481
    %483 = vmatprep.mubr.bf16.mxu0 0
    %484 = vmatmul.mubr.bf16.gmra.mxu0 %v306
    %v485 = vpop.f32.mrf.mxu0
    %v486 = vpop.f32.mrf.mxu0
    %v487 = vpop.f32.mrf.mxu0
    %v488 = vpop.f32.mrf.mxu0
    %489 = vmatprep.mubr.bf16.mxu0 0
    %490 = vmatmul.mubr.bf16.gmra.mxu0 %v309
    %v491 = vpop.f32.mrf.mxu0
    %v492 = vpop.f32.mrf.mxu0
    %v493 = vpop.f32.mrf.mxu0
    %v494 = vpop.f32.mrf.mxu0
    %495 = vdwg.mxu0
    %496 = vmatprep.subr.bf16.mxu0 0
    %497 = vmatpush1.bf16.msra.mxu0 0
    %498 = vmatprep.subr.bf16.mxu0 0
    %499 = vmatpush1.bf16.msra.mxu0 0
    %500 = vmatprep.subr.bf16.mxu0 0
    %501 = vmatpush1.bf16.msra.mxu0 0
    %502 = vmatprep.subr.bf16.mxu0 %v241
    %503 = vmatpush1.bf16.msra.mxu0 %v240
    %504 = vmatprep.subr.bf16.mxu0 %v237
    %505 = vmatpush1.bf16.msra.mxu0 %v236
    %506 = vmatprep.subr.bf16.mxu0 %v233
    %507 = vmatpush1.bf16.msra.mxu0 %v232
    %508 = vmatprep.subr.bf16.mxu0 %v229
    %509 = vmatpush1.bf16.msra.mxu0 %v228
    %510 = vmatprep.subr.bf16.mxu0 %v225
    %511 = vmatpush1.bf16.msra.mxu0 %v224
    %512 = vmatprep.subr.bf16.mxu0 0
    %513 = vmatpush2.bf16.msra.mxu0 0
    %514 = vmatprep.subr.bf16.mxu0 0
    %515 = vmatpush2.bf16.msra.mxu0 0
    %516 = vmatprep.subr.bf16.mxu0 0
    %517 = vmatpush2.bf16.msra.mxu0 0
    %518 = vmatprep.subr.bf16.mxu0 0
    %519 = vmatpush2.bf16.msra.mxu0 0
    %520 = vmatprep.subr.bf16.mxu0 0
    %521 = vmatpush2.bf16.msra.mxu0 0
    %522 = vmatprep.subr.bf16.mxu0 0
    %523 = vmatpush2.bf16.msra.mxu0 0
    %524 = vmatprep.subr.bf16.mxu0 0
    %525 = vmatpush2.bf16.msra.mxu0 0
    %526 = vmatprep.subr.bf16.mxu0 0
    %527 = vmatpush2.bf16.msra.mxu0 0
    %528 = vmatprep.mubr.bf16.mxu0 0
    %529 = vmatmul.mubr.bf16.gmra.mxu0 %v264
    %v530 = vpop.f32.mrf.mxu0
    %v531 = vadd.f32 0.0, %v530
    %v532 = vpop.f32.mrf.mxu0
    %v533 = vadd.f32 0.0, %v532
    %v534 = vpop.f32.mrf.mxu0
    %v535 = vadd.f32 0.0, %v534
    %v536 = vpop.f32.mrf.mxu0
    %v537 = vadd.f32 0.0, %v536
    %538 = vmatprep.mubr.bf16.mxu0 0
    %539 = vmatmul.mubr.bf16.gmra.mxu0 %v267
    %v540 = vpop.f32.mrf.mxu0
    %v541 = vadd.f32 0.0, %v540
    %v542 = vpop.f32.mrf.mxu0
    %v543 = vadd.f32 0.0, %v542
    %v544 = vpop.f32.mrf.mxu0
    %v545 = vadd.f32 0.0, %v544
    %v546 = vpop.f32.mrf.mxu0
    %v547 = vadd.f32 0.0, %v546
    %548 = vmatprep.mubr.bf16.mxu0 0
    %549 = vmatmul.mubr.bf16.gmra.mxu0 %v270
    %v550 = vpop.f32.mrf.mxu0
    %v551 = vadd.f32 0.0, %v550
    %v552 = vpop.f32.mrf.mxu0
    %v553 = vadd.f32 0.0, %v552
    %v554 = vpop.f32.mrf.mxu0
    %v555 = vadd.f32 0.0, %v554
    %v556 = vpop.f32.mrf.mxu0
    %v557 = vadd.f32 0.0, %v556
    %558 = vmatprep.mubr.bf16.mxu0 0
    %559 = vmatmul.mubr.bf16.gmra.mxu0 %v273
    %v560 = vpop.f32.mrf.mxu0
    %v561 = vadd.f32 0.0, %v560
    %v562 = vpop.f32.mrf.mxu0
    %v563 = vadd.f32 0.0, %v562
    %v564 = vpop.f32.mrf.mxu0
    %v565 = vadd.f32 0.0, %v564
    %v566 = vpop.f32.mrf.mxu0
    %v567 = vadd.f32 0.0, %v566
    %568 = vmatprep.mubr.bf16.mxu0 0
    %569 = vmatmul.mubr.bf16.gmra.mxu0 %v276
    %v570 = vpop.f32.mrf.mxu0
    %v571 = vadd.f32 0.0, %v570
    %v572 = vpop.f32.mrf.mxu0
    %v573 = vadd.f32 0.0, %v572
    %v574 = vpop.f32.mrf.mxu0
    %v575 = vadd.f32 0.0, %v574
    %v576 = vpop.f32.mrf.mxu0
    %v577 = vadd.f32 0.0, %v576
    %578 = vmatprep.mubr.bf16.mxu0 0
    %579 = vmatmul.mubr.bf16.gmra.mxu0 %v279
    %v580 = vpop.f32.mrf.mxu0
    %v581 = vadd.f32 0.0, %v580
    %v582 = vpop.f32.mrf.mxu0
    %v583 = vadd.f32 0.0, %v582
    %v584 = vpop.f32.mrf.mxu0
    %v585 = vadd.f32 0.0, %v584
    %v586 = vpop.f32.mrf.mxu0
    %v587 = vadd.f32 0.0, %v586
    %588 = vmatprep.mubr.bf16.mxu0 0
    %589 = vmatmul.mubr.bf16.gmra.mxu0 %v282
    %v590 = vpop.f32.mrf.mxu0
    %v591 = vadd.f32 0.0, %v590
    %v592 = vpop.f32.mrf.mxu0
    %v593 = vadd.f32 0.0, %v592
    %v594 = vpop.f32.mrf.mxu0
    %v595 = vadd.f32 0.0, %v594
    %v596 = vpop.f32.mrf.mxu0
    %v597 = vadd.f32 0.0, %v596
    %598 = vmatprep.mubr.bf16.mxu0 0
    %599 = vmatmul.mubr.bf16.gmra.mxu0 %v285
    %v600 = vpop.f32.mrf.mxu0
    %v601 = vadd.f32 0.0, %v600
    %v602 = vpop.f32.mrf.mxu0
    %v603 = vadd.f32 0.0, %v602
    %v604 = vpop.f32.mrf.mxu0
    %v605 = vadd.f32 0.0, %v604
    %v606 = vpop.f32.mrf.mxu0
    %v607 = vadd.f32 0.0, %v606
    %608 = vmatprep.mubr.bf16.mxu0 0
    %609 = vmatmul.mubr.bf16.gmra.mxu0 %v288
    %v610 = vpop.f32.mrf.mxu0
    %v611 = vadd.f32 0.0, %v610
    %v612 = vpop.f32.mrf.mxu0
    %v613 = vadd.f32 0.0, %v612
    %v614 = vpop.f32.mrf.mxu0
    %v615 = vadd.f32 0.0, %v614
    %v616 = vpop.f32.mrf.mxu0
    %v617 = vadd.f32 0.0, %v616
    %618 = vmatprep.mubr.bf16.mxu0 0
    %619 = vmatmul.mubr.bf16.gmra.mxu0 %v291
    %v620 = vpop.f32.mrf.mxu0
    %v621 = vadd.f32 0.0, %v620
    %v622 = vpop.f32.mrf.mxu0
    %v623 = vadd.f32 0.0, %v622
    %v624 = vpop.f32.mrf.mxu0
    %v625 = vadd.f32 0.0, %v624
    %v626 = vpop.f32.mrf.mxu0
    %v627 = vadd.f32 0.0, %v626
    %628 = vmatprep.mubr.bf16.mxu0 0
    %629 = vmatmul.mubr.bf16.gmra.mxu0 %v294
    %v630 = vpop.f32.mrf.mxu0
    %v631 = vadd.f32 0.0, %v630
    %v632 = vpop.f32.mrf.mxu0
    %v633 = vadd.f32 0.0, %v632
    %v634 = vpop.f32.mrf.mxu0
    %v635 = vadd.f32 0.0, %v634
    %v636 = vpop.f32.mrf.mxu0
    %v637 = vadd.f32 0.0, %v636
    %638 = vmatprep.mubr.bf16.mxu0 0
    %639 = vmatmul.mubr.bf16.gmra.mxu0 %v297
    %v640 = vpop.f32.mrf.mxu0
    %v641 = vadd.f32 0.0, %v640
    %v642 = vpop.f32.mrf.mxu0
    %v643 = vadd.f32 0.0, %v642
    %v644 = vpop.f32.mrf.mxu0
    %v645 = vadd.f32 0.0, %v644
    %v646 = vpop.f32.mrf.mxu0
    %v647 = vadd.f32 0.0, %v646
    %648 = vmatprep.mubr.bf16.mxu0 0
    %649 = vmatmul.mubr.bf16.gmra.mxu0 %v300
    %v650 = vpop.f32.mrf.mxu0
    %v651 = vadd.f32 0.0, %v650
    %v652 = vpop.f32.mrf.mxu0
    %v653 = vadd.f32 0.0, %v652
    %v654 = vpop.f32.mrf.mxu0
    %v655 = vadd.f32 0.0, %v654
    %v656 = vpop.f32.mrf.mxu0
    %v657 = vadd.f32 0.0, %v656
    %658 = vmatprep.mubr.bf16.mxu0 0
    %659 = vmatmul.mubr.bf16.gmra.mxu0 %v303
    %v660 = vpop.f32.mrf.mxu0
    %v661 = vadd.f32 0.0, %v660
    %v662 = vpop.f32.mrf.mxu0
    %v663 = vadd.f32 0.0, %v662
    %v664 = vpop.f32.mrf.mxu0
    %v665 = vadd.f32 0.0, %v664
    %v666 = vpop.f32.mrf.mxu0
    %v667 = vadd.f32 0.0, %v666
    %668 = vmatprep.mubr.bf16.mxu0 0
    %669 = vmatmul.mubr.bf16.gmra.mxu0 %v306
    %v670 = vpop.f32.mrf.mxu0
    %v671 = vpop.f32.mrf.mxu0
    %v672 = vpop.f32.mrf.mxu0
    %v673 = vpop.f32.mrf.mxu0
    %674 = vmatprep.mubr.bf16.mxu0 0
    %675 = vmatmul.mubr.bf16.gmra.mxu0 %v309
    %v676 = vpop.f32.mrf.mxu0
    %v677 = vpop.f32.mrf.mxu0
    %v678 = vpop.f32.mrf.mxu0
    %v679 = vpop.f32.mrf.mxu0
    %680 = vdwg.mxu0
    %v681 = vxor.u32 %v346, 2147483648
    %v682 = vxor.u32 %v348, 2147483648
    %v683 = vxor.u32 %v531, 2147483648
    %v684 = vxor.u32 %v533, 2147483648
    %v685 = vxor.u32 %v350, 2147483648
    %v686 = vxor.u32 %v352, 2147483648
    %v687 = vxor.u32 %v535, 2147483648
    %v688 = vxor.u32 %v537, 2147483648
    %v689 = vxor.u32 %v356, 2147483648
    %v690 = vxor.u32 %v358, 2147483648
    %v691 = vxor.u32 %v541, 2147483648
    %v692 = vxor.u32 %v543, 2147483648
    %v693 = vxor.u32 %v360, 2147483648
    %v694 = vxor.u32 %v362, 2147483648
    %v695 = vxor.u32 %v545, 2147483648
    %v696 = vxor.u32 %v547, 2147483648
    %v697 = vmul.f32 %v681, 1.442695
    %v698 = vpow.pop %v697
    %v699 = vmul.f32 %v682, 1.442695
    %v700 = vpow.pop %v699
    %v701 = vmul.f32 %v683, 1.442695
    %v702 = vpow.pop %v701
    %v703 = vmul.f32 %v684, 1.442695
    %v704 = vpow.pop %v703
    %v705 = vmul.f32 %v685, 1.442695
    %v706 = vpow.pop %v705
    %v707 = vmul.f32 %v686, 1.442695
    %v708 = vpow.pop %v707
    %v709 = vmul.f32 %v687, 1.442695
    %v710 = vpow.pop %v709
    %v711 = vmul.f32 %v688, 1.442695
    %v712 = vpow.pop %v711
    %v713 = vmul.f32 %v689, 1.442695
    %v714 = vpow.pop %v713
    %v715 = vmul.f32 %v690, 1.442695
    %v716 = vpow.pop %v715
    %v717 = vmul.f32 %v691, 1.442695
    %v718 = vpow.pop %v717
    %v719 = vmul.f32 %v692, 1.442695
    %v720 = vpow.pop %v719
    %v721 = vmul.f32 %v693, 1.442695
    %v722 = vpow.pop %v721
    %v723 = vmul.f32 %v694, 1.442695
    %v724 = vpow.pop %v723
    %v725 = vmul.f32 %v695, 1.442695
    %v726 = vpow.pop %v725
    %v727 = vmul.f32 %v696, 1.442695
    %v728 = vpow.pop %v727
    %v729 = vadd.f32 %v698, 1.0
    %v730 = vadd.f32 %v700, 1.0
    %v731 = vadd.f32 %v702, 1.0
    %v732 = vadd.f32 %v704, 1.0
    %v733 = vadd.f32 %v706, 1.0
    %v734 = vadd.f32 %v708, 1.0
    %v735 = vadd.f32 %v710, 1.0
    %v736 = vadd.f32 %v712, 1.0
    %v737 = vadd.f32 %v714, 1.0
    %v738 = vadd.f32 %v716, 1.0
    %v739 = vadd.f32 %v718, 1.0
    %v740 = vadd.f32 %v720, 1.0
    %v741 = vadd.f32 %v722, 1.0
    %v742 = vadd.f32 %v724, 1.0
    %v743 = vadd.f32 %v726, 1.0
    %v744 = vadd.f32 %v728, 1.0
    %v745 = vrcp.pop %v729
    %v746 = vmul.f32 1.0, %v745
    %v747 = vrcp.pop %v730
    %v748 = vmul.f32 1.0, %v747
    %v749 = vrcp.pop %v731
    %v750 = vmul.f32 1.0, %v749
    %v751 = vrcp.pop %v732
    %v752 = vmul.f32 1.0, %v751
    %v753 = vrcp.pop %v733
    %v754 = vmul.f32 1.0, %v753
    %v755 = vrcp.pop %v734
    %v756 = vmul.f32 1.0, %v755
    %v757 = vrcp.pop %v735
    %v758 = vmul.f32 1.0, %v757
    %v759 = vrcp.pop %v736
    %v760 = vmul.f32 1.0, %v759
    %v761 = vrcp.pop %v737
    %v762 = vmul.f32 1.0, %v761
    %v763 = vrcp.pop %v738
    %v764 = vmul.f32 1.0, %v763
    %v765 = vrcp.pop %v739
    %v766 = vmul.f32 1.0, %v765
    %v767 = vrcp.pop %v740
    %v768 = vmul.f32 1.0, %v767
    %v769 = vrcp.pop %v741
    %v770 = vmul.f32 1.0, %v769
    %v771 = vrcp.pop %v742
    %v772 = vmul.f32 1.0, %v771
    %v773 = vrcp.pop %v743
    %v774 = vmul.f32 1.0, %v773
    %v775 = vrcp.pop %v744
    %v776 = vmul.f32 1.0, %v775
    %v777 = vxor.u32 %v366, 2147483648
    %v778 = vxor.u32 %v368, 2147483648
    %v779 = vxor.u32 %v551, 2147483648
    %v780 = vxor.u32 %v553, 2147483648
    %v781 = vxor.u32 %v370, 2147483648
    %v782 = vxor.u32 %v372, 2147483648
    %v783 = vxor.u32 %v555, 2147483648
    %v784 = vxor.u32 %v557, 2147483648
    %v785 = vxor.u32 %v376, 2147483648
    %v786 = vxor.u32 %v378, 2147483648
    %v787 = vxor.u32 %v561, 2147483648
    %v788 = vxor.u32 %v563, 2147483648
    %v789 = vxor.u32 %v380, 2147483648
    %v790 = vxor.u32 %v382, 2147483648
    %v791 = vxor.u32 %v565, 2147483648
    %v792 = vxor.u32 %v567, 2147483648
    %v793 = vmul.f32 %v777, 1.442695
    %v794 = vpow.pop %v793
    %v795 = vmul.f32 %v778, 1.442695
    %v796 = vpow.pop %v795
    %v797 = vmul.f32 %v779, 1.442695
    %v798 = vpow.pop %v797
    %v799 = vmul.f32 %v780, 1.442695
    %v800 = vpow.pop %v799
    %v801 = vmul.f32 %v781, 1.442695
    %v802 = vpow.pop %v801
    %v803 = vmul.f32 %v782, 1.442695
    %v804 = vpow.pop %v803
    %v805 = vmul.f32 %v783, 1.442695
    %v806 = vpow.pop %v805
    %v807 = vmul.f32 %v784, 1.442695
    %v808 = vpow.pop %v807
    %v809 = vmul.f32 %v785, 1.442695
    %v810 = vpow.pop %v809
    %v811 = vmul.f32 %v786, 1.442695
    %v812 = vpow.pop %v811
    %v813 = vmul.f32 %v787, 1.442695
    %v814 = vpow.pop %v813
    %v815 = vmul.f32 %v788, 1.442695
    %v816 = vpow.pop %v815
    %v817 = vmul.f32 %v789, 1.442695
    %v818 = vpow.pop %v817
    %v819 = vmul.f32 %v790, 1.442695
    %v820 = vpow.pop %v819
    %v821 = vmul.f32 %v791, 1.442695
    %v822 = vpow.pop %v821
    %v823 = vmul.f32 %v792, 1.442695
    %v824 = vpow.pop %v823
    %v825 = vadd.f32 %v794, 1.0
    %v826 = vadd.f32 %v796, 1.0
    %v827 = vadd.f32 %v798, 1.0
    %v828 = vadd.f32 %v800, 1.0
    %v829 = vadd.f32 %v802, 1.0
    %v830 = vadd.f32 %v804, 1.0
    %v831 = vadd.f32 %v806, 1.0
    %v832 = vadd.f32 %v808, 1.0
    %v833 = vadd.f32 %v810, 1.0
    %v834 = vadd.f32 %v812, 1.0
    %v835 = vadd.f32 %v814, 1.0
    %v836 = vadd.f32 %v816, 1.0
    %v837 = vadd.f32 %v818, 1.0
    %v838 = vadd.f32 %v820, 1.0
    %v839 = vadd.f32 %v822, 1.0
    %v840 = vadd.f32 %v824, 1.0
    %v841 = vrcp.pop %v825
    %v842 = vmul.f32 1.0, %v841
    %v843 = vrcp.pop %v826
    %v844 = vmul.f32 1.0, %v843
    %v845 = vrcp.pop %v827
    %v846 = vmul.f32 1.0, %v845
    %v847 = vrcp.pop %v828
    %v848 = vmul.f32 1.0, %v847
    %v849 = vrcp.pop %v829
    %v850 = vmul.f32 1.0, %v849
    %v851 = vrcp.pop %v830
    %v852 = vmul.f32 1.0, %v851
    %v853 = vrcp.pop %v831
    %v854 = vmul.f32 1.0, %v853
    %v855 = vrcp.pop %v832
    %v856 = vmul.f32 1.0, %v855
    %v857 = vrcp.pop %v833
    %v858 = vmul.f32 1.0, %v857
    %v859 = vrcp.pop %v834
    %v860 = vmul.f32 1.0, %v859
    %v861 = vrcp.pop %v835
    %v862 = vmul.f32 1.0, %v861
    %v863 = vrcp.pop %v836
    %v864 = vmul.f32 1.0, %v863
    %v865 = vrcp.pop %v837
    %v866 = vmul.f32 1.0, %v865
    %v867 = vrcp.pop %v838
    %v868 = vmul.f32 1.0, %v867
    %v869 = vrcp.pop %v839
    %v870 = vmul.f32 1.0, %v869
    %v871 = vrcp.pop %v840
    %v872 = vmul.f32 1.0, %v871
    %v873 = vxor.u32 %v386, 2147483648
    %v874 = vxor.u32 %v388, 2147483648
    %v875 = vxor.u32 %v571, 2147483648
    %v876 = vxor.u32 %v573, 2147483648
    %v877 = vxor.u32 %v390, 2147483648
    %v878 = vxor.u32 %v392, 2147483648
    %v879 = vxor.u32 %v575, 2147483648
    %v880 = vxor.u32 %v577, 2147483648
    %v881 = vxor.u32 %v396, 2147483648
    %v882 = vxor.u32 %v398, 2147483648
    %v883 = vxor.u32 %v581, 2147483648
    %v884 = vxor.u32 %v583, 2147483648
    %v885 = vxor.u32 %v400, 2147483648
    %v886 = vxor.u32 %v402, 2147483648
    %v887 = vxor.u32 %v585, 2147483648
    %v888 = vxor.u32 %v587, 2147483648
    %v889 = vmul.f32 %v873, 1.442695
    %v890 = vpow.pop %v889
    %v891 = vmul.f32 %v874, 1.442695
    %v892 = vpow.pop %v891
    %v893 = vmul.f32 %v875, 1.442695
    %v894 = vpow.pop %v893
    %v895 = vmul.f32 %v876, 1.442695
    %v896 = vpow.pop %v895
    %v897 = vmul.f32 %v877, 1.442695
    %v898 = vpow.pop %v897
    %v899 = vmul.f32 %v878, 1.442695
    %v900 = vpow.pop %v899
    %v901 = vmul.f32 %v879, 1.442695
    %v902 = vpow.pop %v901
    %v903 = vmul.f32 %v880, 1.442695
    %v904 = vpow.pop %v903
    %v905 = vmul.f32 %v881, 1.442695
    %v906 = vpow.pop %v905
    %v907 = vmul.f32 %v882, 1.442695
    %v908 = vpow.pop %v907
    %v909 = vmul.f32 %v883, 1.442695
    %v910 = vpow.pop %v909
    %v911 = vmul.f32 %v884, 1.442695
    %v912 = vpow.pop %v911
    %v913 = vmul.f32 %v885, 1.442695
    %v914 = vpow.pop %v913
    %v915 = vmul.f32 %v886, 1.442695
    %v916 = vpow.pop %v915
    %v917 = vmul.f32 %v887, 1.442695
    %v918 = vpow.pop %v917
    %v919 = vmul.f32 %v888, 1.442695
    %v920 = vpow.pop %v919
    %v921 = vadd.f32 %v890, 1.0
    %v922 = vadd.f32 %v892, 1.0
    %v923 = vadd.f32 %v894, 1.0
    %v924 = vadd.f32 %v896, 1.0
    %v925 = vadd.f32 %v898, 1.0
    %v926 = vadd.f32 %v900, 1.0
    %v927 = vadd.f32 %v902, 1.0
    %v928 = vadd.f32 %v904, 1.0
    %v929 = vadd.f32 %v906, 1.0
    %v930 = vadd.f32 %v908, 1.0
    %v931 = vadd.f32 %v910, 1.0
    %v932 = vadd.f32 %v912, 1.0
    %v933 = vadd.f32 %v914, 1.0
    %v934 = vadd.f32 %v916, 1.0
    %v935 = vadd.f32 %v918, 1.0
    %v936 = vadd.f32 %v920, 1.0
    %v937 = vrcp.pop %v921
    %v938 = vmul.f32 1.0, %v937
    %v939 = vrcp.pop %v922
    %v940 = vmul.f32 1.0, %v939
    %v941 = vrcp.pop %v923
    %v942 = vmul.f32 1.0, %v941
    %v943 = vrcp.pop %v924
    %v944 = vmul.f32 1.0, %v943
    %v945 = vrcp.pop %v925
    %v946 = vmul.f32 1.0, %v945
    %v947 = vrcp.pop %v926
    %v948 = vmul.f32 1.0, %v947
    %v949 = vrcp.pop %v927
    %v950 = vmul.f32 1.0, %v949
    %v951 = vrcp.pop %v928
    %v952 = vmul.f32 1.0, %v951
    %v953 = vrcp.pop %v929
    %v954 = vmul.f32 1.0, %v953
    %v955 = vrcp.pop %v930
    %v956 = vmul.f32 1.0, %v955
    %v957 = vrcp.pop %v931
    %v958 = vmul.f32 1.0, %v957
    %v959 = vrcp.pop %v932
    %v960 = vmul.f32 1.0, %v959
    %v961 = vrcp.pop %v933
    %v962 = vmul.f32 1.0, %v961
    %v963 = vrcp.pop %v934
    %v964 = vmul.f32 1.0, %v963
    %v965 = vrcp.pop %v935
    %v966 = vmul.f32 1.0, %v965
    %v967 = vrcp.pop %v936
    %v968 = vmul.f32 1.0, %v967
    %v969 = vtanh.pop %v406
    %v970 = vtanh.pop %v408
    %v971 = vtanh.pop %v591
    %v972 = vtanh.pop %v593
    %v973 = vtanh.pop %v410
    %v974 = vtanh.pop %v412
    %v975 = vtanh.pop %v595
    %v976 = vtanh.pop %v597
    %v977 = vtanh.pop %v416
    %v978 = vtanh.pop %v418
    %v979 = vtanh.pop %v601
    %v980 = vtanh.pop %v603
    %v981 = vtanh.pop %v420
    %v982 = vtanh.pop %v422
    %v983 = vtanh.pop %v605
    %v984 = vtanh.pop %v607
    %v985 = vxor.u32 %v426, 2147483648
    %v986 = vxor.u32 %v428, 2147483648
    %v987 = vxor.u32 %v611, 2147483648
    %v988 = vxor.u32 %v613, 2147483648
    %v989 = vxor.u32 %v430, 2147483648
    %v990 = vxor.u32 %v432, 2147483648
    %v991 = vxor.u32 %v615, 2147483648
    %v992 = vxor.u32 %v617, 2147483648
    %v993 = vxor.u32 %v436, 2147483648
    %v994 = vxor.u32 %v438, 2147483648
    %v995 = vxor.u32 %v621, 2147483648
    %v996 = vxor.u32 %v623, 2147483648
    %v997 = vxor.u32 %v440, 2147483648
    %v998 = vxor.u32 %v442, 2147483648
    %v999 = vxor.u32 %v625, 2147483648
    %v1000 = vxor.u32 %v627, 2147483648
    %v1001 = vmul.f32 %v985, 1.442695
    %v1002 = vpow.pop %v1001
    %v1003 = vmul.f32 %v986, 1.442695
    %v1004 = vpow.pop %v1003
    %v1005 = vmul.f32 %v987, 1.442695
    %v1006 = vpow.pop %v1005
    %v1007 = vmul.f32 %v988, 1.442695
    %v1008 = vpow.pop %v1007
    %v1009 = vmul.f32 %v989, 1.442695
    %v1010 = vpow.pop %v1009
    %v1011 = vmul.f32 %v990, 1.442695
    %v1012 = vpow.pop %v1011
    %v1013 = vmul.f32 %v991, 1.442695
    %v1014 = vpow.pop %v1013
    %v1015 = vmul.f32 %v992, 1.442695
    %v1016 = vpow.pop %v1015
    %v1017 = vmul.f32 %v993, 1.442695
    %v1018 = vpow.pop %v1017
    %v1019 = vmul.f32 %v994, 1.442695
    %v1020 = vpow.pop %v1019
    %v1021 = vmul.f32 %v995, 1.442695
    %v1022 = vpow.pop %v1021
    %v1023 = vmul.f32 %v996, 1.442695
    %v1024 = vpow.pop %v1023
    %v1025 = vmul.f32 %v997, 1.442695
    %v1026 = vpow.pop %v1025
    %v1027 = vmul.f32 %v998, 1.442695
    %v1028 = vpow.pop %v1027
    %v1029 = vmul.f32 %v999, 1.442695
    %v1030 = vpow.pop %v1029
    %v1031 = vmul.f32 %v1000, 1.442695
    %v1032 = vpow.pop %v1031
    %v1033 = vadd.f32 %v1002, 1.0
    %v1034 = vadd.f32 %v1004, 1.0
    %v1035 = vadd.f32 %v1006, 1.0
    %v1036 = vadd.f32 %v1008, 1.0
    %v1037 = vadd.f32 %v1010, 1.0
    %v1038 = vadd.f32 %v1012, 1.0
    %v1039 = vadd.f32 %v1014, 1.0
    %v1040 = vadd.f32 %v1016, 1.0
    %v1041 = vadd.f32 %v1018, 1.0
    %v1042 = vadd.f32 %v1020, 1.0
    %v1043 = vadd.f32 %v1022, 1.0
    %v1044 = vadd.f32 %v1024, 1.0
    %v1045 = vadd.f32 %v1026, 1.0
    %v1046 = vadd.f32 %v1028, 1.0
    %v1047 = vadd.f32 %v1030, 1.0
    %v1048 = vadd.f32 %v1032, 1.0
    %v1049 = vrcp.pop %v1033
    %v1050 = vmul.f32 1.0, %v1049
    %v1051 = vrcp.pop %v1034
    %v1052 = vmul.f32 1.0, %v1051
    %v1053 = vrcp.pop %v1035
    %v1054 = vmul.f32 1.0, %v1053
    %v1055 = vrcp.pop %v1036
    %v1056 = vmul.f32 1.0, %v1055
    %v1057 = vrcp.pop %v1037
    %v1058 = vmul.f32 1.0, %v1057
    %v1059 = vrcp.pop %v1038
    %v1060 = vmul.f32 1.0, %v1059
    %v1061 = vrcp.pop %v1039
    %v1062 = vmul.f32 1.0, %v1061
    %v1063 = vrcp.pop %v1040
    %v1064 = vmul.f32 1.0, %v1063
    %v1065 = vrcp.pop %v1041
    %v1066 = vmul.f32 1.0, %v1065
    %v1067 = vrcp.pop %v1042
    %v1068 = vmul.f32 1.0, %v1067
    %v1069 = vrcp.pop %v1043
    %v1070 = vmul.f32 1.0, %v1069
    %v1071 = vrcp.pop %v1044
    %v1072 = vmul.f32 1.0, %v1071
    %v1073 = vrcp.pop %v1045
    %v1074 = vmul.f32 1.0, %v1073
    %v1075 = vrcp.pop %v1046
    %v1076 = vmul.f32 1.0, %v1075
    %v1077 = vrcp.pop %v1047
    %v1078 = vmul.f32 1.0, %v1077
    %v1079 = vrcp.pop %v1048
    %v1080 = vmul.f32 1.0, %v1079
    %v1081 = vxor.u32 %v446, 2147483648
    %v1082 = vxor.u32 %v448, 2147483648
    %v1083 = vxor.u32 %v631, 2147483648
    %v1084 = vxor.u32 %v633, 2147483648
    %v1085 = vxor.u32 %v450, 2147483648
    %v1086 = vxor.u32 %v452, 2147483648
    %v1087 = vxor.u32 %v635, 2147483648
    %v1088 = vxor.u32 %v637, 2147483648
    %v1089 = vxor.u32 %v456, 2147483648
    %v1090 = vxor.u32 %v458, 2147483648
    %v1091 = vxor.u32 %v641, 2147483648
    %v1092 = vxor.u32 %v643, 2147483648
    %v1093 = vxor.u32 %v460, 2147483648
    %v1094 = vxor.u32 %v462, 2147483648
    %v1095 = vxor.u32 %v645, 2147483648
    %v1096 = vxor.u32 %v647, 2147483648
    %v1097 = vmul.f32 %v1081, 1.442695
    %v1098 = vpow.pop %v1097
    %v1099 = vmul.f32 %v1082, 1.442695
    %v1100 = vpow.pop %v1099
    %v1101 = vmul.f32 %v1083, 1.442695
    %v1102 = vpow.pop %v1101
    %v1103 = vmul.f32 %v1084, 1.442695
    %v1104 = vpow.pop %v1103
    %v1105 = vmul.f32 %v1085, 1.442695
    %v1106 = vpow.pop %v1105
    %v1107 = vmul.f32 %v1086, 1.442695
    %v1108 = vpow.pop %v1107
    %v1109 = vmul.f32 %v1087, 1.442695
    %v1110 = vpow.pop %v1109
    %v1111 = vmul.f32 %v1088, 1.442695
    %v1112 = vpow.pop %v1111
    %v1113 = vmul.f32 %v1089, 1.442695
    %v1114 = vpow.pop %v1113
    %v1115 = vmul.f32 %v1090, 1.442695
    %v1116 = vpow.pop %v1115
    %v1117 = vmul.f32 %v1091, 1.442695
    %v1118 = vpow.pop %v1117
    %v1119 = vmul.f32 %v1092, 1.442695
    %v1120 = vpow.pop %v1119
    %v1121 = vmul.f32 %v1093, 1.442695
    %v1122 = vpow.pop %v1121
    %v1123 = vmul.f32 %v1094, 1.442695
    %v1124 = vpow.pop %v1123
    %v1125 = vmul.f32 %v1095, 1.442695
    %v1126 = vpow.pop %v1125
    %v1127 = vmul.f32 %v1096, 1.442695
    %v1128 = vpow.pop %v1127
    %v1129 = vadd.f32 %v1098, 1.0
    %v1130 = vadd.f32 %v1100, 1.0
    %v1131 = vadd.f32 %v1102, 1.0
    %v1132 = vadd.f32 %v1104, 1.0
    %v1133 = vadd.f32 %v1106, 1.0
    %v1134 = vadd.f32 %v1108, 1.0
    %v1135 = vadd.f32 %v1110, 1.0
    %v1136 = vadd.f32 %v1112, 1.0
    %v1137 = vadd.f32 %v1114, 1.0
    %v1138 = vadd.f32 %v1116, 1.0
    %v1139 = vadd.f32 %v1118, 1.0
    %v1140 = vadd.f32 %v1120, 1.0
    %v1141 = vadd.f32 %v1122, 1.0
    %v1142 = vadd.f32 %v1124, 1.0
    %v1143 = vadd.f32 %v1126, 1.0
    %v1144 = vadd.f32 %v1128, 1.0
    %v1145 = vrcp.pop %v1129
    %v1146 = vmul.f32 1.0, %v1145
    %v1147 = vrcp.pop %v1130
    %v1148 = vmul.f32 1.0, %v1147
    %v1149 = vrcp.pop %v1131
    %v1150 = vmul.f32 1.0, %v1149
    %v1151 = vrcp.pop %v1132
    %v1152 = vmul.f32 1.0, %v1151
    %v1153 = vrcp.pop %v1133
    %v1154 = vmul.f32 1.0, %v1153
    %v1155 = vrcp.pop %v1134
    %v1156 = vmul.f32 1.0, %v1155
    %v1157 = vrcp.pop %v1135
    %v1158 = vmul.f32 1.0, %v1157
    %v1159 = vrcp.pop %v1136
    %v1160 = vmul.f32 1.0, %v1159
    %v1161 = vrcp.pop %v1137
    %v1162 = vmul.f32 1.0, %v1161
    %v1163 = vrcp.pop %v1138
    %v1164 = vmul.f32 1.0, %v1163
    %v1165 = vrcp.pop %v1139
    %v1166 = vmul.f32 1.0, %v1165
    %v1167 = vrcp.pop %v1140
    %v1168 = vmul.f32 1.0, %v1167
    %v1169 = vrcp.pop %v1141
    %v1170 = vmul.f32 1.0, %v1169
    %v1171 = vrcp.pop %v1142
    %v1172 = vmul.f32 1.0, %v1171
    %v1173 = vrcp.pop %v1143
    %v1174 = vmul.f32 1.0, %v1173
    %v1175 = vrcp.pop %v1144
    %v1176 = vmul.f32 1.0, %v1175
    %v1177 = vmul.f32 %v466, 0.2
    %v1178 = vmul.f32 %v468, 0.2
    %v1179 = vmul.f32 %v651, 0.2
    %v1180 = vmul.f32 %v653, 0.2
    %v1181 = vmul.f32 %v470, 0.2
    %v1182 = vmul.f32 %v472, 0.2
    %v1183 = vmul.f32 %v655, 0.2
    %v1184 = vmul.f32 %v657, 0.2
    %v1185 = vmul.f32 %v476, 0.2
    %v1186 = vmul.f32 %v478, 0.2
    %v1187 = vmul.f32 %v661, 0.2
    %v1188 = vmul.f32 %v663, 0.2
    %v1189 = vmul.f32 %v480, 0.2
    %v1190 = vmul.f32 %v482, 0.2
    %v1191 = vmul.f32 %v665, 0.2
    %v1192 = vmul.f32 %v667, 0.2
    %v1193 = vxor.u32 %v1177, 2147483648
    %v1194 = vxor.u32 %v1178, 2147483648
    %v1195 = vxor.u32 %v1179, 2147483648
    %v1196 = vxor.u32 %v1180, 2147483648
    %v1197 = vxor.u32 %v1181, 2147483648
    %v1198 = vxor.u32 %v1182, 2147483648
    %v1199 = vxor.u32 %v1183, 2147483648
    %v1200 = vxor.u32 %v1184, 2147483648
    %v1201 = vxor.u32 %v1185, 2147483648
    %v1202 = vxor.u32 %v1186, 2147483648
    %v1203 = vxor.u32 %v1187, 2147483648
    %v1204 = vxor.u32 %v1188, 2147483648
    %v1205 = vxor.u32 %v1189, 2147483648
    %v1206 = vxor.u32 %v1190, 2147483648
    %v1207 = vxor.u32 %v1191, 2147483648
    %v1208 = vxor.u32 %v1192, 2147483648
    %v1209 = vmul.f32 %v1193, 1.442695
    %v1210 = vpow.pop %v1209
    %v1211 = vmul.f32 %v1194, 1.442695
    %v1212 = vpow.pop %v1211
    %v1213 = vmul.f32 %v1195, 1.442695
    %v1214 = vpow.pop %v1213
    %v1215 = vmul.f32 %v1196, 1.442695
    %v1216 = vpow.pop %v1215
    %v1217 = vmul.f32 %v1197, 1.442695
    %v1218 = vpow.pop %v1217
    %v1219 = vmul.f32 %v1198, 1.442695
    %v1220 = vpow.pop %v1219
    %v1221 = vmul.f32 %v1199, 1.442695
    %v1222 = vpow.pop %v1221
    %v1223 = vmul.f32 %v1200, 1.442695
    %v1224 = vpow.pop %v1223
    %v1225 = vmul.f32 %v1201, 1.442695
    %v1226 = vpow.pop %v1225
    %v1227 = vmul.f32 %v1202, 1.442695
    %v1228 = vpow.pop %v1227
    %v1229 = vmul.f32 %v1203, 1.442695
    %v1230 = vpow.pop %v1229
    %v1231 = vmul.f32 %v1204, 1.442695
    %v1232 = vpow.pop %v1231
    %v1233 = vmul.f32 %v1205, 1.442695
    %v1234 = vpow.pop %v1233
    %v1235 = vmul.f32 %v1206, 1.442695
    %v1236 = vpow.pop %v1235
    %v1237 = vmul.f32 %v1207, 1.442695
    %v1238 = vpow.pop %v1237
    %v1239 = vmul.f32 %v1208, 1.442695
    %v1240 = vpow.pop %v1239
    %v1241 = vadd.f32 %v1210, 1.0
    %v1242 = vadd.f32 %v1212, 1.0
    %v1243 = vadd.f32 %v1214, 1.0
    %v1244 = vadd.f32 %v1216, 1.0
    %v1245 = vadd.f32 %v1218, 1.0
    %v1246 = vadd.f32 %v1220, 1.0
    %v1247 = vadd.f32 %v1222, 1.0
    %v1248 = vadd.f32 %v1224, 1.0
    %v1249 = vadd.f32 %v1226, 1.0
    %v1250 = vadd.f32 %v1228, 1.0
    %v1251 = vadd.f32 %v1230, 1.0
    %v1252 = vadd.f32 %v1232, 1.0
    %v1253 = vadd.f32 %v1234, 1.0
    %v1254 = vadd.f32 %v1236, 1.0
    %v1255 = vadd.f32 %v1238, 1.0
    %v1256 = vadd.f32 %v1240, 1.0
    %v1257 = vrcp.pop %v1241
    %v1258 = vmul.f32 1.0, %v1257
    %v1259 = vrcp.pop %v1242
    %v1260 = vmul.f32 1.0, %v1259
    %v1261 = vrcp.pop %v1243
    %v1262 = vmul.f32 1.0, %v1261
    %v1263 = vrcp.pop %v1244
    %v1264 = vmul.f32 1.0, %v1263
    %v1265 = vrcp.pop %v1245
    %v1266 = vmul.f32 1.0, %v1265
    %v1267 = vrcp.pop %v1246
    %v1268 = vmul.f32 1.0, %v1267
    %v1269 = vrcp.pop %v1247
    %v1270 = vmul.f32 1.0, %v1269
    %v1271 = vrcp.pop %v1248
    %v1272 = vmul.f32 1.0, %v1271
    %v1273 = vrcp.pop %v1249
    %v1274 = vmul.f32 1.0, %v1273
    %v1275 = vrcp.pop %v1250
    %v1276 = vmul.f32 1.0, %v1275
    %v1277 = vrcp.pop %v1251
    %v1278 = vmul.f32 1.0, %v1277
    %v1279 = vrcp.pop %v1252
    %v1280 = vmul.f32 1.0, %v1279
    %v1281 = vrcp.pop %v1253
    %v1282 = vmul.f32 1.0, %v1281
    %v1283 = vrcp.pop %v1254
    %v1284 = vmul.f32 1.0, %v1283
    %v1285 = vrcp.pop %v1255
    %v1286 = vmul.f32 1.0, %v1285
    %v1287 = vrcp.pop %v1256
    %v1288 = vmul.f32 1.0, %v1287
    %v1289 = vmul.f32 %v1258, 5.0
    %v1290 = vmul.f32 %v1260, 5.0
    %v1291 = vmul.f32 %v1262, 5.0
    %v1292 = vmul.f32 %v1264, 5.0
    %v1293 = vmul.f32 %v1266, 5.0
    %v1294 = vmul.f32 %v1268, 5.0
    %v1295 = vmul.f32 %v1270, 5.0
    %v1296 = vmul.f32 %v1272, 5.0
    %v1297 = vmul.f32 %v1274, 5.0
    %v1298 = vmul.f32 %v1276, 5.0
    %v1299 = vmul.f32 %v1278, 5.0
    %v1300 = vmul.f32 %v1280, 5.0
    %v1301 = vmul.f32 %v1282, 5.0
    %v1302 = vmul.f32 %v1284, 5.0
    %v1303 = vmul.f32 %v1286, 5.0
    %v1304 = vmul.f32 %v1288, 5.0
    %v1305 = vld [vmem:[#allocation2] sm:$0xff]
    %v1306 = vld [vmem:[#allocation2 + $0x8] sm:$0xff]
    %v1307 = vld [vmem:[#allocation2 + $0x10] sm:$0xff]
    %v1308 = vld [vmem:[#allocation2 + $0x18] sm:$0xff]
    %v1309 = vld [vmem:[#allocation2 + $0x20] sm:$0xff]
    %v1310 = vld [vmem:[#allocation2 + $0x28] sm:$0xff]
    %v1311 = vld [vmem:[#allocation2 + $0x30] sm:$0xff]
    %v1312 = vld [vmem:[#allocation2 + $0x38] sm:$0xff]
    %v1313 = vld [vmem:[#allocation2 + $0x40] sm:$0xff]
    %v1314 = vld [vmem:[#allocation2 + $0x48] sm:$0xff]
    %v1315 = vld [vmem:[#allocation2 + $0x50] sm:$0xff]
    %v1316 = vld [vmem:[#allocation2 + $0x58] sm:$0xff]
    %v1317 = vld [vmem:[#allocation2 + $0x60] sm:$0xff]
    %v1318 = vld [vmem:[#allocation2 + $0x68] sm:$0xff]
    %v1319 = vld [vmem:[#allocation2 + $0x70] sm:$0xff]
    %v1320 = vld [vmem:[#allocation2 + $0x78] sm:$0xff]
    %v1321 = vld [vmem:[#allocation2 + $0x80] sm:$0xff]
    %v1322 = vld [vmem:[#allocation2 + $0x88] sm:$0xff]
    %v1323 = vld [vmem:[#allocation2 + $0x90] sm:$0xff]
    %v1324 = vld [vmem:[#allocation2 + $0x98] sm:$0xff]
    %v1325 = vld [vmem:[#allocation2 + $0xa0] sm:$0xff]
    %v1326 = vld [vmem:[#allocation2 + $0xa8] sm:$0xff]
    %v1327 = vld [vmem:[#allocation2 + $0xb0] sm:$0xff]
    %v1328 = vld [vmem:[#allocation2 + $0xb8] sm:$0xff]
    %v1329 = vld [vmem:[#allocation2 + $0xc0] sm:$0xff]
    %v1330 = vld [vmem:[#allocation2 + $0xc8] sm:$0xff]
    %v1331 = vld [vmem:[#allocation2 + $0xd0] sm:$0xff]
    %v1332 = vld [vmem:[#allocation2 + $0xd8] sm:$0xff]
    %v1333 = vld [vmem:[#allocation2 + $0xe0] sm:$0xff]
    %v1334 = vld [vmem:[#allocation2 + $0xe8] sm:$0xff]
    %v1335 = vld [vmem:[#allocation2 + $0xf0] sm:$0xff]
    %v1336 = vld [vmem:[#allocation2 + $0xf8] sm:$0xff]
    %v1337 = vmul.f32 %v842, %v1305
    %v1338 = vmul.f32 %v844, %v1306
    %v1339 = vmul.f32 %v846, %v1307
    %v1340 = vmul.f32 %v848, %v1308
    %v1341 = vmul.f32 %v850, %v1309
    %v1342 = vmul.f32 %v852, %v1310
    %v1343 = vmul.f32 %v854, %v1311
    %v1344 = vmul.f32 %v856, %v1312
    %v1345 = vmul.f32 %v858, %v1313
    %v1346 = vmul.f32 %v860, %v1314
    %v1347 = vmul.f32 %v862, %v1315
    %v1348 = vmul.f32 %v864, %v1316
    %v1349 = vmul.f32 %v866, %v1317
    %v1350 = vmul.f32 %v868, %v1318
    %v1351 = vmul.f32 %v870, %v1319
    %v1352 = vmul.f32 %v872, %v1320
    %v1353 = vmul.f32 %v746, %v969
    %v1354 = vmul.f32 %v748, %v970
    %v1355 = vmul.f32 %v750, %v971
    %v1356 = vmul.f32 %v752, %v972
    %v1357 = vmul.f32 %v754, %v973
    %v1358 = vmul.f32 %v756, %v974
    %v1359 = vmul.f32 %v758, %v975
    %v1360 = vmul.f32 %v760, %v976
    %v1361 = vmul.f32 %v762, %v977
    %v1362 = vmul.f32 %v764, %v978
    %v1363 = vmul.f32 %v766, %v979
    %v1364 = vmul.f32 %v768, %v980
    %v1365 = vmul.f32 %v770, %v981
    %v1366 = vmul.f32 %v772, %v982
    %v1367 = vmul.f32 %v774, %v983
    %v1368 = vmul.f32 %v776, %v984
    %v1369 = vadd.f32 %v1337, %v1353
    %v1370 = vadd.f32 %v1338, %v1354
    %v1371 = vadd.f32 %v1339, %v1355
    %v1372 = vadd.f32 %v1340, %v1356
    %v1373 = vadd.f32 %v1341, %v1357
    %v1374 = vadd.f32 %v1342, %v1358
    %v1375 = vadd.f32 %v1343, %v1359
    %v1376 = vadd.f32 %v1344, %v1360
    %v1377 = vadd.f32 %v1345, %v1361
    %v1378 = vadd.f32 %v1346, %v1362
    %v1379 = vadd.f32 %v1347, %v1363
    %v1380 = vadd.f32 %v1348, %v1364
    %v1381 = vadd.f32 %v1349, %v1365
    %v1382 = vadd.f32 %v1350, %v1366
    %v1383 = vadd.f32 %v1351, %v1367
    %v1384 = vadd.f32 %v1352, %v1368
    %v1385 = vmul.f32 %v1146, %v1321
    %v1386 = vmul.f32 %v1148, %v1322
    %v1387 = vmul.f32 %v1150, %v1323
    %v1388 = vmul.f32 %v1152, %v1324
    %v1389 = vmul.f32 %v1154, %v1325
    %v1390 = vmul.f32 %v1156, %v1326
    %v1391 = vmul.f32 %v1158, %v1327
    %v1392 = vmul.f32 %v1160, %v1328
    %v1393 = vmul.f32 %v1162, %v1329
    %v1394 = vmul.f32 %v1164, %v1330
    %v1395 = vmul.f32 %v1166, %v1331
    %v1396 = vmul.f32 %v1168, %v1332
    %v1397 = vmul.f32 %v1170, %v1333
    %v1398 = vmul.f32 %v1172, %v1334
    %v1399 = vmul.f32 %v1174, %v1335
    %v1400 = vmul.f32 %v1176, %v1336
    %v1401 = vmul.f32 %v1050, %v969
    %v1402 = vmul.f32 %v1052, %v970
    %v1403 = vmul.f32 %v1054, %v971
    %v1404 = vmul.f32 %v1056, %v972
    %v1405 = vmul.f32 %v1058, %v973
    %v1406 = vmul.f32 %v1060, %v974
    %v1407 = vmul.f32 %v1062, %v975
    %v1408 = vmul.f32 %v1064, %v976
    %v1409 = vmul.f32 %v1066, %v977
    %v1410 = vmul.f32 %v1068, %v978
    %v1411 = vmul.f32 %v1070, %v979
    %v1412 = vmul.f32 %v1072, %v980
    %v1413 = vmul.f32 %v1074, %v981
    %v1414 = vmul.f32 %v1076, %v982
    %v1415 = vmul.f32 %v1078, %v983
    %v1416 = vmul.f32 %v1080, %v984
    %v1417 = vadd.f32 %v1385, %v1401
    %v1418 = vadd.f32 %v1386, %v1402
    %v1419 = vadd.f32 %v1387, %v1403
    %v1420 = vadd.f32 %v1388, %v1404
    %v1421 = vadd.f32 %v1389, %v1405
    %v1422 = vadd.f32 %v1390, %v1406
    %v1423 = vadd.f32 %v1391, %v1407
    %v1424 = vadd.f32 %v1392, %v1408
    %v1425 = vadd.f32 %v1393, %v1409
    %v1426 = vadd.f32 %v1394, %v1410
    %v1427 = vadd.f32 %v1395, %v1411
    %v1428 = vadd.f32 %v1396, %v1412
    %v1429 = vadd.f32 %v1397, %v1413
    %v1430 = vadd.f32 %v1398, %v1414
    %v1431 = vadd.f32 %v1399, %v1415
    %v1432 = vadd.f32 %v1400, %v1416
    %v1433 = vsub.f32 %v1369, %v1417
    %v1434 = vsub.f32 %v1370, %v1418
    %v1435 = vsub.f32 %v1371, %v1419
    %v1436 = vsub.f32 %v1372, %v1420
    %v1437 = vsub.f32 %v1373, %v1421
    %v1438 = vsub.f32 %v1374, %v1422
    %v1439 = vsub.f32 %v1375, %v1423
    %v1440 = vsub.f32 %v1376, %v1424
    %v1441 = vsub.f32 %v1377, %v1425
    %v1442 = vsub.f32 %v1378, %v1426
    %v1443 = vsub.f32 %v1379, %v1427
    %v1444 = vsub.f32 %v1380, %v1428
    %v1445 = vsub.f32 %v1381, %v1429
    %v1446 = vsub.f32 %v1382, %v1430
    %v1447 = vsub.f32 %v1383, %v1431
    %v1448 = vsub.f32 %v1384, %v1432
    %v1449 = vsub.f32 0.0, %v1289
    %v1450 = vsub.f32 0.0, %v1290
    %v1451 = vsub.f32 0.0, %v1291
    %v1452 = vsub.f32 0.0, %v1292
    %v1453 = vsub.f32 0.0, %v1293
    %v1454 = vsub.f32 0.0, %v1294
    %v1455 = vsub.f32 0.0, %v1295
    %v1456 = vsub.f32 0.0, %v1296
    %v1457 = vsub.f32 0.0, %v1297
    %v1458 = vsub.f32 0.0, %v1298
    %v1459 = vsub.f32 0.0, %v1299
    %v1460 = vsub.f32 0.0, %v1300
    %v1461 = vsub.f32 0.0, %v1301
    %v1462 = vsub.f32 0.0, %v1302
    %v1463 = vsub.f32 0.0, %v1303
    %v1464 = vsub.f32 0.0, %v1304
    %v1465 = vmul.f32 %v1449, 1.442695
    %v1466 = vpow.pop %v1465
    %v1467 = vmul.f32 %v1450, 1.442695
    %v1468 = vpow.pop %v1467
    %v1469 = vmul.f32 %v1451, 1.442695
    %v1470 = vpow.pop %v1469
    %v1471 = vmul.f32 %v1452, 1.442695
    %v1472 = vpow.pop %v1471
    %v1473 = vmul.f32 %v1453, 1.442695
    %v1474 = vpow.pop %v1473
    %v1475 = vmul.f32 %v1454, 1.442695
    %v1476 = vpow.pop %v1475
    %v1477 = vmul.f32 %v1455, 1.442695
    %v1478 = vpow.pop %v1477
    %v1479 = vmul.f32 %v1456, 1.442695
    %v1480 = vpow.pop %v1479
    %v1481 = vmul.f32 %v1457, 1.442695
    %v1482 = vpow.pop %v1481
    %v1483 = vmul.f32 %v1458, 1.442695
    %v1484 = vpow.pop %v1483
    %v1485 = vmul.f32 %v1459, 1.442695
    %v1486 = vpow.pop %v1485
    %v1487 = vmul.f32 %v1460, 1.442695
    %v1488 = vpow.pop %v1487
    %v1489 = vmul.f32 %v1461, 1.442695
    %v1490 = vpow.pop %v1489
    %v1491 = vmul.f32 %v1462, 1.442695
    %v1492 = vpow.pop %v1491
    %v1493 = vmul.f32 %v1463, 1.442695
    %v1494 = vpow.pop %v1493
    %v1495 = vmul.f32 %v1464, 1.442695
    %v1496 = vpow.pop %v1495
    %v1497 = vmul.f32 %v1433, %v1466
    %v1498 = vmul.f32 %v1434, %v1468
    %v1499 = vmul.f32 %v1435, %v1470
    %v1500 = vmul.f32 %v1436, %v1472
    %v1501 = vmul.f32 %v1437, %v1474
    %v1502 = vmul.f32 %v1438, %v1476
    %v1503 = vmul.f32 %v1439, %v1478
    %v1504 = vmul.f32 %v1440, %v1480
    %v1505 = vmul.f32 %v1441, %v1482
    %v1506 = vmul.f32 %v1442, %v1484
    %v1507 = vmul.f32 %v1443, %v1486
    %v1508 = vmul.f32 %v1444, %v1488
    %v1509 = vmul.f32 %v1445, %v1490
    %v1510 = vmul.f32 %v1446, %v1492
    %v1511 = vmul.f32 %v1447, %v1494
    %v1512 = vmul.f32 %v1448, %v1496
    %v1513 = vadd.f32 %v1417, %v1497
    %v1514 = vadd.f32 %v1418, %v1498
    %v1515 = vadd.f32 %v1419, %v1499
    %v1516 = vadd.f32 %v1420, %v1500
    %v1517 = vadd.f32 %v1421, %v1501
    %v1518 = vadd.f32 %v1422, %v1502
    %v1519 = vadd.f32 %v1423, %v1503
    %v1520 = vadd.f32 %v1424, %v1504
    %v1521 = vadd.f32 %v1425, %v1505
    %v1522 = vadd.f32 %v1426, %v1506
    %v1523 = vadd.f32 %v1427, %v1507
    %v1524 = vadd.f32 %v1428, %v1508
    %v1525 = vadd.f32 %v1429, %v1509
    %v1526 = vadd.f32 %v1430, %v1510
    %v1527 = vadd.f32 %v1431, %v1511
    %v1528 = vadd.f32 %v1432, %v1512
    %v1529 = vtanh.pop %v1513
    %v1530 = vtanh.pop %v1514
    %v1531 = vtanh.pop %v1515
    %v1532 = vtanh.pop %v1516
    %v1533 = vtanh.pop %v1517
    %v1534 = vtanh.pop %v1518
    %v1535 = vtanh.pop %v1519
    %v1536 = vtanh.pop %v1520
    %v1537 = vtanh.pop %v1521
    %v1538 = vtanh.pop %v1522
    %v1539 = vtanh.pop %v1523
    %v1540 = vtanh.pop %v1524
    %v1541 = vtanh.pop %v1525
    %v1542 = vtanh.pop %v1526
    %v1543 = vtanh.pop %v1527
    %v1544 = vtanh.pop %v1528
    %v1545 = vmul.f32 %v938, %v1529
    %v1546 = vmul.f32 %v940, %v1530
    %v1547 = vmul.f32 %v942, %v1531
    %v1548 = vmul.f32 %v944, %v1532
    %v1549 = vmul.f32 %v946, %v1533
    %v1550 = vmul.f32 %v948, %v1534
    %v1551 = vmul.f32 %v950, %v1535
    %v1552 = vmul.f32 %v952, %v1536
    %v1553 = vmul.f32 %v954, %v1537
    %v1554 = vmul.f32 %v956, %v1538
    %v1555 = vmul.f32 %v958, %v1539
    %v1556 = vmul.f32 %v960, %v1540
    %v1557 = vmul.f32 %v962, %v1541
    %v1558 = vmul.f32 %v964, %v1542
    %v1559 = vmul.f32 %v966, %v1543
    %v1560 = vmul.f32 %v968, %v1544
    %1561 = vst [vmem:[#allocation5] sm:$0xff] %v1545
    %1562 = vst [vmem:[#allocation5 + $0x8] sm:$0xff] %v1546
    %1563 = vst [vmem:[#allocation5 + $0x10] sm:$0xff] %v1547
    %1564 = vst [vmem:[#allocation5 + $0x18] sm:$0xff] %v1548
    %1565 = vst [vmem:[#allocation5 + $0x20] sm:$0xff] %v1549
    %1566 = vst [vmem:[#allocation5 + $0x28] sm:$0xff] %v1550
    %1567 = vst [vmem:[#allocation5 + $0x30] sm:$0xff] %v1551
    %1568 = vst [vmem:[#allocation5 + $0x38] sm:$0xff] %v1552
    %1569 = vst [vmem:[#allocation5 + $0x40] sm:$0xff] %v1553
    %1570 = vst [vmem:[#allocation5 + $0x48] sm:$0xff] %v1554
    %1571 = vst [vmem:[#allocation5 + $0x50] sm:$0xff] %v1555
    %1572 = vst [vmem:[#allocation5 + $0x58] sm:$0xff] %v1556
    %1573 = vst [vmem:[#allocation5 + $0x60] sm:$0xff] %v1557
    %1574 = vst [vmem:[#allocation5 + $0x68] sm:$0xff] %v1558
    %1575 = vst [vmem:[#allocation5 + $0x70] sm:$0xff] %v1559
    %1576 = vst [vmem:[#allocation5 + $0x78] sm:$0xff] %v1560
    %1577 = vst [vmem:[#allocation5 + $0x80] sm:$0xff] %v1369
    %1578 = vst [vmem:[#allocation5 + $0x88] sm:$0xff] %v1370
    %1579 = vst [vmem:[#allocation5 + $0x90] sm:$0xff] %v1371
    %1580 = vst [vmem:[#allocation5 + $0x98] sm:$0xff] %v1372
    %1581 = vst [vmem:[#allocation5 + $0xa0] sm:$0xff] %v1373
    %1582 = vst [vmem:[#allocation5 + $0xa8] sm:$0xff] %v1374
    %1583 = vst [vmem:[#allocation5 + $0xb0] sm:$0xff] %v1375
    %1584 = vst [vmem:[#allocation5 + $0xb8] sm:$0xff] %v1376
    %1585 = vst [vmem:[#allocation5 + $0xc0] sm:$0xff] %v1377
    %1586 = vst [vmem:[#allocation5 + $0xc8] sm:$0xff] %v1378
    %1587 = vst [vmem:[#allocation5 + $0xd0] sm:$0xff] %v1379
    %1588 = vst [vmem:[#allocation5 + $0xd8] sm:$0xff] %v1380
    %1589 = vst [vmem:[#allocation5 + $0xe0] sm:$0xff] %v1381
    %1590 = vst [vmem:[#allocation5 + $0xe8] sm:$0xff] %v1382
    %1591 = vst [vmem:[#allocation5 + $0xf0] sm:$0xff] %v1383
    %1592 = vst [vmem:[#allocation5 + $0xf8] sm:$0xff] %v1384
    %1593 = vst [vmem:[#allocation5 + $0x100] sm:$0xff] %v1417
    %1594 = vst [vmem:[#allocation5 + $0x108] sm:$0xff] %v1418
    %1595 = vst [vmem:[#allocation5 + $0x110] sm:$0xff] %v1419
    %1596 = vst [vmem:[#allocation5 + $0x118] sm:$0xff] %v1420
    %1597 = vst [vmem:[#allocation5 + $0x120] sm:$0xff] %v1421
    %1598 = vst [vmem:[#allocation5 + $0x128] sm:$0xff] %v1422
    %1599 = vst [vmem:[#allocation5 + $0x130] sm:$0xff] %v1423
    %1600 = vst [vmem:[#allocation5 + $0x138] sm:$0xff] %v1424
    %1601 = vst [vmem:[#allocation5 + $0x140] sm:$0xff] %v1425
    %1602 = vst [vmem:[#allocation5 + $0x148] sm:$0xff] %v1426
    %1603 = vst [vmem:[#allocation5 + $0x150] sm:$0xff] %v1427
    %1604 = vst [vmem:[#allocation5 + $0x158] sm:$0xff] %v1428
    %1605 = vst [vmem:[#allocation5 + $0x160] sm:$0xff] %v1429
    %1606 = vst [vmem:[#allocation5 + $0x168] sm:$0xff] %v1430
    %1607 = vst [vmem:[#allocation5 + $0x170] sm:$0xff] %v1431
    %1608 = vst [vmem:[#allocation5 + $0x178] sm:$0xff] %v1432
    // Predicated region
    $region18: #{tpu_custom_call.1} parent=1 // pred_check
      _
    $region19: #{tpu_custom_call.1} parent=1 // pred_check_branch
      %1610 = sbr.rel (0) target = $region21
    $region20: #{tpu_custom_call.1} parent=1 // pred_region
      %s1612 = ssub.s32 6144, 6144
      %1613 = vsyncadd [#allocation4], %s1612
      %s1614 = sshll.u32 [#allocation5], 4
      %s1615 = int_to_ptr.vmem [resolvable:$true] %s1614
      %1620 = dma.vmem_to_hbm [thread:$0]  %s1615, 6144, %s3, [#allocation4], 512, 512, 32
    $region21: #{tpu_custom_call.1} parent=1 // pred_fallthru
      _
    // Predicated region
    $region22: #{tpu_custom_call.1} parent=1 // pred_check
      _
    $region23: #{tpu_custom_call.1} parent=1 // pred_check_branch
      %1622 = sbr.rel (0) target = $region25
    $region24: #{tpu_custom_call.1} parent=1 // pred_region
      %1623 = dma.done [#allocation4], 6144
    $region25: #{tpu_custom_call.1} parent=1 // pred_fallthru
      _
    %1624 = vsyncpa [#allocation3], 1
    %1625 = vsyncpa [#allocation4], 1

</llo_original>
